<compile_context>
chip_gen: v5e
topology: v5e:2x2
jax: 0.10.0
libtpu: 0.0.40
codegen_flags: <defaults>
</compile_context>

<pallas_src>
import functools

import jax
import jax.numpy as jnp
from jax.experimental import pallas as pl
from jax.experimental.pallas import tpu as pltpu


def _round_up(x, m):
    return (x + m - 1) // m * m


def _tpu_config():
    """Returns (is_dual_core_v7x, vmem_budget_bytes) with conservative fallbacks."""
    kind = ""
    try:
        kind = jax.devices()[0].device_kind.lower()
    except Exception:
        pass
    is_v7 = "7" in kind                       # v7x: 2 TensorCores, 64 MiB VMEM per TC
    if is_v7:
        budget = 56 * 2**20
    elif ("v5" in kind) or ("v6" in kind):    # v5e / v6e: 1 TC, 128 MiB VMEM
        budget = 112 * 2**20
    else:
        budget = 48 * 2**20                   # unknown chip: be conservative
    try:
        cap = int(pltpu.get_tpu_info().vmem_capacity_bytes)
        budget = min(budget, max(16 * 2**20, cap - 8 * 2**20))
    except Exception:
        pass
    return is_v7, budget


def _gru_chunk_kernel(gi_ref, w_hh_ref, bhn_ref, out_ref, h_ref, *,
                      tc, b_blk, h_pad, unroll):
    """One grid step == one chunk of `tc` time steps for one batch block.

    gi_ref : (tc, b_blk, 3*h_pad)  precomputed x @ W_ih^T + b_ih (+ b_hh[r,z]); compute dtype
    w_hh_ref: (h_pad, 3*h_pad)     W_hh^T, gate-padded, resident in VMEM (compute dtype)
    bhn_ref : (1, h_pad)           b_hh of the "new" gate (must stay inside r * (.)); fp32
    out_ref : (tc, b_blk, h_pad)   fp32 outputs
    h_ref   : (b_blk, h_pad)       carried hidden state (fp32 VMEM scratch)
    """
    t_chunk = pl.program_id(1)

    @pl.when(t_chunk == 0)
    def _():
        h_ref[...] = jnp.zeros_like(h_ref)

    # Hoisted once per chunk, reused for all tc steps.
    w_hh = w_hh_ref[...]                                  # stays in compute dtype (bf16/fp32)
    compute_dtype = w_hh.dtype
    bn = jnp.broadcast_to(bhn_ref[...], (b_blk, h_pad))   # hoisted broadcast

    def step(i, h):
        gi = gi_ref[i].astype(jnp.float32)                          # (b_blk, 3*h_pad)
        gh = jnp.dot(h.astype(compute_dtype), w_hh,
                     preferred_element_type=jnp.float32)            # (b_blk, 3*h_pad)
        # Gate slices are lane-tile aligned (each gate is h_pad = k*128 lanes wide).
        r = jax.nn.sigmoid(gi[:, 0:h_pad] + gh[:, 0:h_pad])
        z = jax.nn.sigmoid(gi[:, h_pad:2 * h_pad] + gh[:, h_pad:2 * h_pad])
        n = jnp.tanh(gi[:, 2 * h_pad:] + r * (gh[:, 2 * h_pad:] + bn))
        h_new = n + z * (h - n)                                     # == (1-z)*n + z*h
        out_ref[i] = h_new.astype(out_ref.dtype)                    # lane-dense store
        return h_new

    h_ref[...] = jax.lax.fori_loop(0, tc, step, h_ref[...], unroll=unroll)


def simple_recurrent_layer(inputs, w_ih, w_hh, b_ih, b_hh, *,
                           compute_dtype=jnp.bfloat16):
    """inputs: (T, B, D_in).  w_ih: (3H, D_in), w_hh: (3H, H), b_ih/b_hh: (3H,)
    (PyTorch GRUCell layout, gate order [r | z | n]).  Returns (T, B, H) float32.

    compute_dtype controls matmul operand dtype and GI/W_hh storage; hidden-state carry,
    gate math and outputs are always fp32."""
    inputs = jnp.asarray(inputs, jnp.float32)
    w_ih = jnp.asarray(w_ih, jnp.float32)
    w_hh = jnp.asarray(w_hh, jnp.float32)
    b_ih = jnp.asarray(b_ih, jnp.float32)
    b_hh = jnp.asarray(b_hh, jnp.float32)

    T, B, D_in = inputs.shape
    H = w_hh.shape[1]

    H_pad = _round_up(H, 128)          # each gate lane-aligned
    B_pad = _round_up(B, 8)            # sublane-aligned batch

    is_v7, vmem_budget = _tpu_config()

    # Batch split only on dual-TC v7x and only when each half still feeds the MXU meaningfully.
    if is_v7 and B_pad >= 64 and B_pad % 16 == 0:
        B_blk = B_pad // 2
    else:
        B_blk = B_pad
    nB = B_pad // B_blk

    c_bytes = jnp.dtype(compute_dtype).itemsize

    # --- VMEM-aware time chunk.  Budget: double-buffered GI + output tiles, resident weights
    #     counted TWICE (so the double-buffered-weights fallback also fits), hidden scratch.
    resident = (2 * H_pad * 3 * H_pad * c_bytes      # W_hh^T (x2 for fallback buffering)
                + 2 * 8 * H_pad * 4                  # b_hh_n tile (sublane-padded)
                + B_blk * H_pad * 4)                 # hidden-state scratch
    per_step = 2 * B_blk * (3 * H_pad * c_bytes + H_pad * 4)   # GI + fp32 output, x2 buffers
    avail = vmem_budget - resident - 2 * 2**20
    Tc = int(max(1, min(T, 128, avail // per_step))) if avail > per_step else 1
    T_pad = _round_up(T, Tc)
    nT = T_pad // Tc

    # --- Unroll capped by rough vreg pressure of one step (gh footprint).
    step_vregs = pl.cdiv(B_blk, 8) * pl.cdiv(3 * H_pad, 128)
    if step_vregs <= 6:
        unroll = min(Tc, 32)
    elif step_vregs <= 24:
        unroll = min(Tc, 8)
    else:
        unroll = min(Tc, 4)

    # --- Hoisted input projection: one big matmul, bf16 operands + fp32 accumulation.
    #     Fold b_ih and b_hh[r,z] in (b_hh_n cannot fold: it sits inside r * (h@W_hh_n + b_hh_n)).
    bias_fold = b_ih + jnp.concatenate([b_hh[:2 * H], jnp.zeros((H,), jnp.float32)])
    gi = jnp.dot(inputs.reshape(T * B, D_in).astype(compute_dtype),
                 jnp.transpose(w_ih).astype(compute_dtype),
                 preferred_element_type=jnp.float32) + bias_fold          # (T*B, 3H) fp32
    gi = gi.reshape(T, B, 3, H)
    gi = jnp.pad(gi, ((0, T_pad - T), (0, B_pad - B), (0, 0), (0, H_pad - H)))
    gi = gi.reshape(T_pad, B_pad, 3 * H_pad).astype(compute_dtype)        # bf16 in HBM

    # --- W_hh^T with each gate block zero-padded to H_pad lanes; padded h lanes stay 0.
    w_hh_g = w_hh.reshape(3, H, H)                                        # (gate, out_h, in_h)
    w_hh_t = jnp.transpose(w_hh_g, (2, 0, 1))                             # (in_h, gate, out_h)
    w_hh_pad = jnp.pad(w_hh_t, ((0, H_pad - H), (0, 0), (0, H_pad - H)))
    w_hh_pad = w_hh_pad.reshape(H_pad, 3 * H_pad).astype(compute_dtype)   # bf16 resident weight
    bhn_pad = jnp.pad(b_hh[2 * H:], (0, H_pad - H)).reshape(1, H_pad)     # fp32 (inside r*(.))

    kernel = functools.partial(_gru_chunk_kernel, tc=Tc, b_blk=B_blk,
                               h_pad=H_pad, unroll=unroll)

    def _resident_map(b, t):
        return (0, 0)

    def _resident_spec(shape, single_buffer):
        if single_buffer:
            # Constant index_map -> no need to double-buffer; halves weight VMEM footprint.
            return pl.BlockSpec(shape, _resident_map, pipeline_mode=pl.Buffered(1))
        return pl.BlockSpec(shape, _resident_map)

    def _run(single_buffer):
        return pl.pallas_call(
            kernel,
            out_shape=jax.ShapeDtypeStruct((T_pad, B_pad, H_pad), jnp.float32),
            grid_spec=pltpu.PrefetchScalarGridSpec(
                num_scalar_prefetch=0,
                grid=(nB, nT),
                in_specs=[
                    # TODO(synk): if GI DMA is exposed on v5e, sweep pipeline_mode=pl.Buffered(3).
                    pl.BlockSpec((Tc, B_blk, 3 * H_pad), lambda b, t: (t, b, 0)),  # GI chunk
                    _resident_spec((H_pad, 3 * H_pad), single_buffer),             # W_hh^T
                    _resident_spec((1, H_pad), single_buffer),                     # b_hh_n
                ],
                out_specs=pl.BlockSpec((Tc, B_blk, H_pad), lambda b, t: (t, b, 0)),
                scratch_shapes=[pltpu.VMEM((B_blk, H_pad), jnp.float32)],  # carried hidden
            ),
            compiler_params=pltpu.CompilerParams(
                dimension_semantics=("parallel", "arbitrary"),   # batch-blocks ∥, time seq.
                vmem_limit_bytes=int(vmem_budget),
            ),
        )(gi, w_hh_pad, bhn_pad)

    # Narrow fallback: only for pipeline_mode / Buffered(1) rejection by this JAX version,
    # not arbitrary failures.  Tc was sized assuming double-buffered weights, so the fallback
    # never exceeds the budget.
    fallback_errors = (TypeError, ValueError, NotImplementedError)
    for exc in (getattr(pltpu, "LoweringException", None),
                getattr(jax.errors, "JaxRuntimeError", None)):
        if exc is not None:
            fallback_errors = fallback_errors + (exc,)

    if hasattr(pl, "Buffered"):
        try:
            out_pad = _run(single_buffer=True)
        except fallback_errors:
            out_pad = _run(single_buffer=False)
    else:
        out_pad = _run(single_buffer=False)

    return out_pad[:T, :B, :H]


def _reference(inputs, w_ih, w_hh, b_ih, b_hh):
    """Pure-JAX reference implementing the torch.nn.GRUCell scan."""
    H = w_hh.shape[1]

    def cell(h, x):
        gi = x @ w_ih.T + b_ih
        gh = h @ w_hh.T + b_hh
        i_r, i_z, i_n = jnp.split(gi, 3, axis=-1)
        h_r, h_z, h_n = jnp.split(gh, 3, axis=-1)
        r = jax.nn.sigmoid(i_r + h_r)
        z = jax.nn.sigmoid(i_z + h_z)
        n = jnp.tanh(i_n + r * h_n)
        h_new = (1.0 - z) * n + z * h
        return h_new, h_new

    h0 = jnp.zeros((inputs.shape[1], H), inputs.dtype)
    _, outs = jax.lax.scan(cell, h0, inputs)
    return outs


if __name__ == "__main__":
    T, B, D_in, HID = 8, 2, 16, 32

    key = jax.random.PRNGKey(0)
    k_x, k_wi, k_wh, k_bi, k_bh = jax.random.split(key, 5)

    # Deterministic parameter init, PyTorch-style U(-1/sqrt(H), 1/sqrt(H)).
    bound = 1.0 / jnp.sqrt(jnp.float32(HID))
    w_ih = jax.random.uniform(k_wi, (3 * HID, D_in), jnp.float32, -bound, bound)
    w_hh = jax.random.uniform(k_wh, (3 * HID, HID), jnp.float32, -bound, bound)
    b_ih = jax.random.uniform(k_bi, (3 * HID,), jnp.float32, -bound, bound)
    b_hh = jax.random.uniform(k_bh, (3 * HID,), jnp.float32, -bound, bound)

    inputs = jax.random.normal(k_x, (T, B, D_in), jnp.float32)

    ref = _reference(inputs, w_ih, w_hh, b_ih, b_hh)

    # fp32 compute path: tight tolerance vs the fp32 reference.
    out_fp32 = jax.block_until_ready(
        simple_recurrent_layer(inputs, w_ih, w_hh, b_ih, b_hh, compute_dtype=jnp.float32))
    assert out_fp32.shape == (T, B, HID)
    assert jnp.allclose(out_fp32, ref, atol=1e-4, rtol=1e-4), "fp32 path mismatch"

    # Default path (bf16 matmul operands / GI storage, fp32 accumulation + gate math + carry).
    out = jax.block_until_ready(simple_recurrent_layer(inputs, w_ih, w_hh, b_ih, b_hh))
    assert out.shape == (T, B, HID)
    assert jnp.allclose(out, ref, atol=3e-2, rtol=3e-2), "bf16 path mismatch"

    # TODO(synk): self.dropout is never applied in the PyTorch forward(), so no dropout here.
    print("KERNEL_OK")
</pallas_src>

<mosaic_0001>
module attributes {stable_mosaic.version = 11 : i64} {
  func.func @_gru_chunk_kernel(%arg0: i32, %arg1: i32, %arg2: memref<8x8x384xf32, #tpu.memory_space<vmem>>, %arg3: memref<128x384xf32, #tpu.memory_space<vmem>>, %arg4: memref<1x128xf32, #tpu.memory_space<vmem>>, %arg5: memref<8x8x128xf32, #tpu.memory_space<vmem>>, %arg6: memref<8x128xf32, #tpu.memory_space<vmem>>) attributes {dimension_semantics = [#tpu.dimension_semantics<parallel>, #tpu.dimension_semantics<arbitrary>], iteration_bounds = array<i64: 1, 1>, scalar_prefetch = 0 : i64, scratch_operands = 1 : i64, tpu.core_type = #tpu.core_type<tc>, window_params = [{transform_indices = @transform_0, window_bounds = array<i64: 8, 8, 384>}, {pipeline_mode = #tpu.pipeline_mode<synchronous>, transform_indices = @transform_1, window_bounds = array<i64: 128, 384>}, {pipeline_mode = #tpu.pipeline_mode<synchronous>, transform_indices = @transform_2, window_bounds = array<i64: 1, 128>}, {transform_indices = @transform_3, window_bounds = array<i64: 8, 8, 128>}]} {
    %c0_i32 = arith.constant 0 : i32
    %0 = arith.cmpi eq, %arg1, %c0_i32 : i32
    %1 = arith.extui %0 : i1 to i32
    %c0_i32_0 = arith.constant 0 : i32
    %2 = arith.cmpi ne, %1, %c0_i32_0 : i32
    scf.if %2 {
      %cst_64 = arith.constant 0.000000e+00 : f32
      %273 = vector.broadcast %cst_64 : f32 to vector<8x128xf32>
      %c0_65 = arith.constant 0 : index
      %c0_66 = arith.constant 0 : index
      %274 = vector.load %arg6[%c0_65, %c0_66] : memref<8x128xf32, #tpu.memory_space<vmem>>, vector<8x128xf32>
      tpu.vector_store %arg6[%c0_65, %c0_66], %273 {strides = array<i32>} : memref<8x128xf32, #tpu.memory_space<vmem>>, vector<8x128xf32>,
    } else {
    }
    %c0 = arith.constant 0 : index
    %c0_1 = arith.constant 0 : index
    %3 = vector.load %arg3[%c0, %c0_1] : memref<128x384xf32, #tpu.memory_space<vmem>>, vector<128x384xf32>
    %c0_2 = arith.constant 0 : index
    %c0_3 = arith.constant 0 : index
    %4 = vector.load %arg4[%c0_2, %c0_3] : memref<1x128xf32, #tpu.memory_space<vmem>>, vector<1x128xf32>
    %5 = vector.shape_cast %4 : vector<1x128xf32> to vector<1x128xf32>
    %6 = vector.broadcast %5 : vector<1x128xf32> to vector<8x128xf32>
    %c0_4 = arith.constant 0 : index
    %c0_5 = arith.constant 0 : index
    %7 = vector.load %arg6[%c0_4, %c0_5] : memref<8x128xf32, #tpu.memory_space<vmem>>, vector<8x128xf32>
    %c0_i32_6 = arith.constant 0 : i32
    %8 = arith.index_cast %c0_i32_6 : i32 to index
    %c0_7 = arith.constant 0 : index
    %c0_8 = arith.constant 0 : index
    %9 = vector.load %arg2[%8, %c0_7, %c0_8] : memref<8x8x384xf32, #tpu.memory_space<vmem>>, vector<1x8x384xf32>
    %10 = vector.shape_cast %9 : vector<1x8x384xf32> to vector<8x384xf32>
    %cst = arith.constant dense<0.000000e+00> : vector<8x384xf32>
    %11 = tpu.matmul %7, %3, %cst {dimension_numbers = #tpu.dot_dimension_numbers<[1], [0], [0], [1], [0, 0, 1, 1], [], []>} : vector<8x128xf32>, vector<128x384xf32>, vector<8x384xf32> -> vector<8x384xf32>
    %12 = vector.extract_strided_slice %10 {offsets = [0, 0], sizes = [8, 128], strides = [1, 1]} : vector<8x384xf32> to vector<8x128xf32>
    %13 = vector.extract_strided_slice %11 {offsets = [0, 0], sizes = [8, 128], strides = [1, 1]} : vector<8x384xf32> to vector<8x128xf32>
    %14 = arith.addf %12, %13 : vector<8x128xf32>
    %15 = arith.negf %14 : vector<8x128xf32>
    %16 = math.exp %15 : vector<8x128xf32>
    %cst_9 = arith.constant 1.000000e+00 : f32
    %17 = vector.broadcast %cst_9 : f32 to vector<8x128xf32>
    %18 = arith.addf %17, %16 : vector<8x128xf32>
    %19 = arith.divf %17, %18 : vector<8x128xf32>
    %20 = vector.extract_strided_slice %10 {offsets = [0, 128], sizes = [8, 128], strides = [1, 1]} : vector<8x384xf32> to vector<8x128xf32>
    %21 = vector.extract_strided_slice %11 {offsets = [0, 128], sizes = [8, 128], strides = [1, 1]} : vector<8x384xf32> to vector<8x128xf32>
    %22 = arith.addf %20, %21 : vector<8x128xf32>
    %23 = arith.negf %22 : vector<8x128xf32>
    %24 = math.exp %23 : vector<8x128xf32>
    %cst_10 = arith.constant 1.000000e+00 : f32
    %25 = vector.broadcast %cst_10 : f32 to vector<8x128xf32>
    %26 = arith.addf %25, %24 : vector<8x128xf32>
    %27 = arith.divf %25, %26 : vector<8x128xf32>
    %28 = vector.extract_strided_slice %10 {offsets = [0, 256], sizes = [8, 128], strides = [1, 1]} : vector<8x384xf32> to vector<8x128xf32>
    %29 = vector.extract_strided_slice %11 {offsets = [0, 256], sizes = [8, 128], strides = [1, 1]} : vector<8x384xf32> to vector<8x128xf32>
    %30 = arith.addf %29, %6 : vector<8x128xf32>
    %31 = arith.mulf %19, %30 : vector<8x128xf32>
    %32 = arith.addf %28, %31 : vector<8x128xf32>
    %33 = math.tanh %32 : vector<8x128xf32>
    %34 = arith.subf %7, %33 : vector<8x128xf32>
    %35 = arith.mulf %27, %34 : vector<8x128xf32>
    %36 = arith.addf %33, %35 : vector<8x128xf32>
    %37 = arith.index_cast %c0_i32_6 : i32 to index
    %c0_11 = arith.constant 0 : index
    %c0_12 = arith.constant 0 : index
    %38 = vector.load %arg5[%37, %c0_11, %c0_12] : memref<8x8x128xf32, #tpu.memory_space<vmem>>, vector<1x8x128xf32>
    %39 = vector.shape_cast %38 : vector<1x8x128xf32> to vector<8x128xf32>
    %40 = vector.shape_cast %36 : vector<8x128xf32> to vector<1x8x128xf32>
    tpu.vector_store %arg5[%37, %c0_11, %c0_12], %40 {strides = array<i32>} : memref<8x8x128xf32, #tpu.memory_space<vmem>>, vector<1x8x128xf32>,
    %c1_i32 = arith.constant 1 : i32
    %41 = arith.index_cast %c1_i32 : i32 to index
    %c0_13 = arith.constant 0 : index
    %c0_14 = arith.constant 0 : index
    %42 = vector.load %arg2[%41, %c0_13, %c0_14] : memref<8x8x384xf32, #tpu.memory_space<vmem>>, vector<1x8x384xf32>
    %43 = vector.shape_cast %42 : vector<1x8x384xf32> to vector<8x384xf32>
    %cst_15 = arith.constant dense<0.000000e+00> : vector<8x384xf32>
    %44 = tpu.matmul %36, %3, %cst_15 {dimension_numbers = #tpu.dot_dimension_numbers<[1], [0], [0], [1], [0, 0, 1, 1], [], []>} : vector<8x128xf32>, vector<128x384xf32>, vector<8x384xf32> -> vector<8x384xf32>
    %45 = vector.extract_strided_slice %43 {offsets = [0, 0], sizes = [8, 128], strides = [1, 1]} : vector<8x384xf32> to vector<8x128xf32>
    %46 = vector.extract_strided_slice %44 {offsets = [0, 0], sizes = [8, 128], strides = [1, 1]} : vector<8x384xf32> to vector<8x128xf32>
    %47 = arith.addf %45, %46 : vector<8x128xf32>
    %48 = arith.negf %47 : vector<8x128xf32>
    %49 = math.exp %48 : vector<8x128xf32>
    %cst_16 = arith.constant 1.000000e+00 : f32
    %50 = vector.broadcast %cst_16 : f32 to vector<8x128xf32>
    %51 = arith.addf %50, %49 : vector<8x128xf32>
    %52 = arith.divf %50, %51 : vector<8x128xf32>
    %53 = vector.extract_strided_slice %43 {offsets = [0, 128], sizes = [8, 128], strides = [1, 1]} : vector<8x384xf32> to vector<8x128xf32>
    %54 = vector.extract_strided_slice %44 {offsets = [0, 128], sizes = [8, 128], strides = [1, 1]} : vector<8x384xf32> to vector<8x128xf32>
    %55 = arith.addf %53, %54 : vector<8x128xf32>
    %56 = arith.negf %55 : vector<8x128xf32>
    %57 = math.exp %56 : vector<8x128xf32>
    %cst_17 = arith.constant 1.000000e+00 : f32
    %58 = vector.broadcast %cst_17 : f32 to vector<8x128xf32>
    %59 = arith.addf %58, %57 : vector<8x128xf32>
    %60 = arith.divf %58, %59 : vector<8x128xf32>
    %61 = vector.extract_strided_slice %43 {offsets = [0, 256], sizes = [8, 128], strides = [1, 1]} : vector<8x384xf32> to vector<8x128xf32>
    %62 = vector.extract_strided_slice %44 {offsets = [0, 256], sizes = [8, 128], strides = [1, 1]} : vector<8x384xf32> to vector<8x128xf32>
    %63 = arith.addf %62, %6 : vector<8x128xf32>
    %64 = arith.mulf %52, %63 : vector<8x128xf32>
    %65 = arith.addf %61, %64 : vector<8x128xf32>
    %66 = math.tanh %65 : vector<8x128xf32>
    %67 = arith.subf %36, %66 : vector<8x128xf32>
    %68 = arith.mulf %60, %67 : vector<8x128xf32>
    %69 = arith.addf %66, %68 : vector<8x128xf32>
    %70 = arith.index_cast %c1_i32 : i32 to index
    %c0_18 = arith.constant 0 : index
    %c0_19 = arith.constant 0 : index
    %71 = vector.load %arg5[%70, %c0_18, %c0_19] : memref<8x8x128xf32, #tpu.memory_space<vmem>>, vector<1x8x128xf32>
    %72 = vector.shape_cast %71 : vector<1x8x128xf32> to vector<8x128xf32>
    %73 = vector.shape_cast %69 : vector<8x128xf32> to vector<1x8x128xf32>
    tpu.vector_store %arg5[%70, %c0_18, %c0_19], %73 {strides = array<i32>} : memref<8x8x128xf32, #tpu.memory_space<vmem>>, vector<1x8x128xf32>,
    %c2_i32 = arith.constant 2 : i32
    %74 = arith.index_cast %c2_i32 : i32 to index
    %c0_20 = arith.constant 0 : index
    %c0_21 = arith.constant 0 : index
    %75 = vector.load %arg2[%74, %c0_20, %c0_21] : memref<8x8x384xf32, #tpu.memory_space<vmem>>, vector<1x8x384xf32>
    %76 = vector.shape_cast %75 : vector<1x8x384xf32> to vector<8x384xf32>
    %cst_22 = arith.constant dense<0.000000e+00> : vector<8x384xf32>
    %77 = tpu.matmul %69, %3, %cst_22 {dimension_numbers = #tpu.dot_dimension_numbers<[1], [0], [0], [1], [0, 0, 1, 1], [], []>} : vector<8x128xf32>, vector<128x384xf32>, vector<8x384xf32> -> vector<8x384xf32>
    %78 = vector.extract_strided_slice %76 {offsets = [0, 0], sizes = [8, 128], strides = [1, 1]} : vector<8x384xf32> to vector<8x128xf32>
    %79 = vector.extract_strided_slice %77 {offsets = [0, 0], sizes = [8, 128], strides = [1, 1]} : vector<8x384xf32> to vector<8x128xf32>
    %80 = arith.addf %78, %79 : vector<8x128xf32>
    %81 = arith.negf %80 : vector<8x128xf32>
    %82 = math.exp %81 : vector<8x128xf32>
    %cst_23 = arith.constant 1.000000e+00 : f32
    %83 = vector.broadcast %cst_23 : f32 to vector<8x128xf32>
    %84 = arith.addf %83, %82 : vector<8x128xf32>
    %85 = arith.divf %83, %84 : vector<8x128xf32>
    %86 = vector.extract_strided_slice %76 {offsets = [0, 128], sizes = [8, 128], strides = [1, 1]} : vector<8x384xf32> to vector<8x128xf32>
    %87 = vector.extract_strided_slice %77 {offsets = [0, 128], sizes = [8, 128], strides = [1, 1]} : vector<8x384xf32> to vector<8x128xf32>
    %88 = arith.addf %86, %87 : vector<8x128xf32>
    %89 = arith.negf %88 : vector<8x128xf32>
    %90 = math.exp %89 : vector<8x128xf32>
    %cst_24 = arith.constant 1.000000e+00 : f32
    %91 = vector.broadcast %cst_24 : f32 to vector<8x128xf32>
    %92 = arith.addf %91, %90 : vector<8x128xf32>
    %93 = arith.divf %91, %92 : vector<8x128xf32>
    %94 = vector.extract_strided_slice %76 {offsets = [0, 256], sizes = [8, 128], strides = [1, 1]} : vector<8x384xf32> to vector<8x128xf32>
    %95 = vector.extract_strided_slice %77 {offsets = [0, 256], sizes = [8, 128], strides = [1, 1]} : vector<8x384xf32> to vector<8x128xf32>
    %96 = arith.addf %95, %6 : vector<8x128xf32>
    %97 = arith.mulf %85, %96 : vector<8x128xf32>
    %98 = arith.addf %94, %97 : vector<8x128xf32>
    %99 = math.tanh %98 : vector<8x128xf32>
    %100 = arith.subf %69, %99 : vector<8x128xf32>
    %101 = arith.mulf %93, %100 : vector<8x128xf32>
    %102 = arith.addf %99, %101 : vector<8x128xf32>
    %103 = arith.index_cast %c2_i32 : i32 to index
    %c0_25 = arith.constant 0 : index
    %c0_26 = arith.constant 0 : index
    %104 = vector.load %arg5[%103, %c0_25, %c0_26] : memref<8x8x128xf32, #tpu.memory_space<vmem>>, vector<1x8x128xf32>
    %105 = vector.shape_cast %104 : vector<1x8x128xf32> to vector<8x128xf32>
    %106 = vector.shape_cast %102 : vector<8x128xf32> to vector<1x8x128xf32>
    tpu.vector_store %arg5[%103, %c0_25, %c0_26], %106 {strides = array<i32>} : memref<8x8x128xf32, #tpu.memory_space<vmem>>, vector<1x8x128xf32>,
    %c3_i32 = arith.constant 3 : i32
    %107 = arith.index_cast %c3_i32 : i32 to index
    %c0_27 = arith.constant 0 : index
    %c0_28 = arith.constant 0 : index
    %108 = vector.load %arg2[%107, %c0_27, %c0_28] : memref<8x8x384xf32, #tpu.memory_space<vmem>>, vector<1x8x384xf32>
    %109 = vector.shape_cast %108 : vector<1x8x384xf32> to vector<8x384xf32>
    %cst_29 = arith.constant dense<0.000000e+00> : vector<8x384xf32>
    %110 = tpu.matmul %102, %3, %cst_29 {dimension_numbers = #tpu.dot_dimension_numbers<[1], [0], [0], [1], [0, 0, 1, 1], [], []>} : vector<8x128xf32>, vector<128x384xf32>, vector<8x384xf32> -> vector<8x384xf32>
    %111 = vector.extract_strided_slice %109 {offsets = [0, 0], sizes = [8, 128], strides = [1, 1]} : vector<8x384xf32> to vector<8x128xf32>
    %112 = vector.extract_strided_slice %110 {offsets = [0, 0], sizes = [8, 128], strides = [1, 1]} : vector<8x384xf32> to vector<8x128xf32>
    %113 = arith.addf %111, %112 : vector<8x128xf32>
    %114 = arith.negf %113 : vector<8x128xf32>
    %115 = math.exp %114 : vector<8x128xf32>
    %cst_30 = arith.constant 1.000000e+00 : f32
    %116 = vector.broadcast %cst_30 : f32 to vector<8x128xf32>
    %117 = arith.addf %116, %115 : vector<8x128xf32>
    %118 = arith.divf %116, %117 : vector<8x128xf32>
    %119 = vector.extract_strided_slice %109 {offsets = [0, 128], sizes = [8, 128], strides = [1, 1]} : vector<8x384xf32> to vector<8x128xf32>
    %120 = vector.extract_strided_slice %110 {offsets = [0, 128], sizes = [8, 128], strides = [1, 1]} : vector<8x384xf32> to vector<8x128xf32>
    %121 = arith.addf %119, %120 : vector<8x128xf32>
    %122 = arith.negf %121 : vector<8x128xf32>
    %123 = math.exp %122 : vector<8x128xf32>
    %cst_31 = arith.constant 1.000000e+00 : f32
    %124 = vector.broadcast %cst_31 : f32 to vector<8x128xf32>
    %125 = arith.addf %124, %123 : vector<8x128xf32>
    %126 = arith.divf %124, %125 : vector<8x128xf32>
    %127 = vector.extract_strided_slice %109 {offsets = [0, 256], sizes = [8, 128], strides = [1, 1]} : vector<8x384xf32> to vector<8x128xf32>
    %128 = vector.extract_strided_slice %110 {offsets = [0, 256], sizes = [8, 128], strides = [1, 1]} : vector<8x384xf32> to vector<8x128xf32>
    %129 = arith.addf %128, %6 : vector<8x128xf32>
    %130 = arith.mulf %118, %129 : vector<8x128xf32>
    %131 = arith.addf %127, %130 : vector<8x128xf32>
    %132 = math.tanh %131 : vector<8x128xf32>
    %133 = arith.subf %102, %132 : vector<8x128xf32>
    %134 = arith.mulf %126, %133 : vector<8x128xf32>
    %135 = arith.addf %132, %134 : vector<8x128xf32>
    %136 = arith.index_cast %c3_i32 : i32 to index
    %c0_32 = arith.constant 0 : index
    %c0_33 = arith.constant 0 : index
    %137 = vector.load %arg5[%136, %c0_32, %c0_33] : memref<8x8x128xf32, #tpu.memory_space<vmem>>, vector<1x8x128xf32>
    %138 = vector.shape_cast %137 : vector<1x8x128xf32> to vector<8x128xf32>
    %139 = vector.shape_cast %135 : vector<8x128xf32> to vector<1x8x128xf32>
    tpu.vector_store %arg5[%136, %c0_32, %c0_33], %139 {strides = array<i32>} : memref<8x8x128xf32, #tpu.memory_space<vmem>>, vector<1x8x128xf32>,
    %c4_i32 = arith.constant 4 : i32
    %140 = arith.index_cast %c4_i32 : i32 to index
    %c0_34 = arith.constant 0 : index
    %c0_35 = arith.constant 0 : index
    %141 = vector.load %arg2[%140, %c0_34, %c0_35] : memref<8x8x384xf32, #tpu.memory_space<vmem>>, vector<1x8x384xf32>
    %142 = vector.shape_cast %141 : vector<1x8x384xf32> to vector<8x384xf32>
    %cst_36 = arith.constant dense<0.000000e+00> : vector<8x384xf32>
    %143 = tpu.matmul %135, %3, %cst_36 {dimension_numbers = #tpu.dot_dimension_numbers<[1], [0], [0], [1], [0, 0, 1, 1], [], []>} : vector<8x128xf32>, vector<128x384xf32>, vector<8x384xf32> -> vector<8x384xf32>
    %144 = vector.extract_strided_slice %142 {offsets = [0, 0], sizes = [8, 128], strides = [1, 1]} : vector<8x384xf32> to vector<8x128xf32>
    %145 = vector.extract_strided_slice %143 {offsets = [0, 0], sizes = [8, 128], strides = [1, 1]} : vector<8x384xf32> to vector<8x128xf32>
    %146 = arith.addf %144, %145 : vector<8x128xf32>
    %147 = arith.negf %146 : vector<8x128xf32>
    %148 = math.exp %147 : vector<8x128xf32>
    %cst_37 = arith.constant 1.000000e+00 : f32
    %149 = vector.broadcast %cst_37 : f32 to vector<8x128xf32>
    %150 = arith.addf %149, %148 : vector<8x128xf32>
    %151 = arith.divf %149, %150 : vector<8x128xf32>
    %152 = vector.extract_strided_slice %142 {offsets = [0, 128], sizes = [8, 128], strides = [1, 1]} : vector<8x384xf32> to vector<8x128xf32>
    %153 = vector.extract_strided_slice %143 {offsets = [0, 128], sizes = [8, 128], strides = [1, 1]} : vector<8x384xf32> to vector<8x128xf32>
    %154 = arith.addf %152, %153 : vector<8x128xf32>
    %155 = arith.negf %154 : vector<8x128xf32>
    %156 = math.exp %155 : vector<8x128xf32>
    %cst_38 = arith.constant 1.000000e+00 : f32
    %157 = vector.broadcast %cst_38 : f32 to vector<8x128xf32>
    %158 = arith.addf %157, %156 : vector<8x128xf32>
    %159 = arith.divf %157, %158 : vector<8x128xf32>
    %160 = vector.extract_strided_slice %142 {offsets = [0, 256], sizes = [8, 128], strides = [1, 1]} : vector<8x384xf32> to vector<8x128xf32>
    %161 = vector.extract_strided_slice %143 {offsets = [0, 256], sizes = [8, 128], strides = [1, 1]} : vector<8x384xf32> to vector<8x128xf32>
    %162 = arith.addf %161, %6 : vector<8x128xf32>
    %163 = arith.mulf %151, %162 : vector<8x128xf32>
    %164 = arith.addf %160, %163 : vector<8x128xf32>
    %165 = math.tanh %164 : vector<8x128xf32>
    %166 = arith.subf %135, %165 : vector<8x128xf32>
    %167 = arith.mulf %159, %166 : vector<8x128xf32>
    %168 = arith.addf %165, %167 : vector<8x128xf32>
    %169 = arith.index_cast %c4_i32 : i32 to index
    %c0_39 = arith.constant 0 : index
    %c0_40 = arith.constant 0 : index
    %170 = vector.load %arg5[%169, %c0_39, %c0_40] : memref<8x8x128xf32, #tpu.memory_space<vmem>>, vector<1x8x128xf32>
    %171 = vector.shape_cast %170 : vector<1x8x128xf32> to vector<8x128xf32>
    %172 = vector.shape_cast %168 : vector<8x128xf32> to vector<1x8x128xf32>
    tpu.vector_store %arg5[%169, %c0_39, %c0_40], %172 {strides = array<i32>} : memref<8x8x128xf32, #tpu.memory_space<vmem>>, vector<1x8x128xf32>,
    %c5_i32 = arith.constant 5 : i32
    %173 = arith.index_cast %c5_i32 : i32 to index
    %c0_41 = arith.constant 0 : index
    %c0_42 = arith.constant 0 : index
    %174 = vector.load %arg2[%173, %c0_41, %c0_42] : memref<8x8x384xf32, #tpu.memory_space<vmem>>, vector<1x8x384xf32>
    %175 = vector.shape_cast %174 : vector<1x8x384xf32> to vector<8x384xf32>
    %cst_43 = arith.constant dense<0.000000e+00> : vector<8x384xf32>
    %176 = tpu.matmul %168, %3, %cst_43 {dimension_numbers = #tpu.dot_dimension_numbers<[1], [0], [0], [1], [0, 0, 1, 1], [], []>} : vector<8x128xf32>, vector<128x384xf32>, vector<8x384xf32> -> vector<8x384xf32>
    %177 = vector.extract_strided_slice %175 {offsets = [0, 0], sizes = [8, 128], strides = [1, 1]} : vector<8x384xf32> to vector<8x128xf32>
    %178 = vector.extract_strided_slice %176 {offsets = [0, 0], sizes = [8, 128], strides = [1, 1]} : vector<8x384xf32> to vector<8x128xf32>
    %179 = arith.addf %177, %178 : vector<8x128xf32>
    %180 = arith.negf %179 : vector<8x128xf32>
    %181 = math.exp %180 : vector<8x128xf32>
    %cst_44 = arith.constant 1.000000e+00 : f32
    %182 = vector.broadcast %cst_44 : f32 to vector<8x128xf32>
    %183 = arith.addf %182, %181 : vector<8x128xf32>
    %184 = arith.divf %182, %183 : vector<8x128xf32>
    %185 = vector.extract_strided_slice %175 {offsets = [0, 128], sizes = [8, 128], strides = [1, 1]} : vector<8x384xf32> to vector<8x128xf32>
    %186 = vector.extract_strided_slice %176 {offsets = [0, 128], sizes = [8, 128], strides = [1, 1]} : vector<8x384xf32> to vector<8x128xf32>
    %187 = arith.addf %185, %186 : vector<8x128xf32>
    %188 = arith.negf %187 : vector<8x128xf32>
    %189 = math.exp %188 : vector<8x128xf32>
    %cst_45 = arith.constant 1.000000e+00 : f32
    %190 = vector.broadcast %cst_45 : f32 to vector<8x128xf32>
    %191 = arith.addf %190, %189 : vector<8x128xf32>
    %192 = arith.divf %190, %191 : vector<8x128xf32>
    %193 = vector.extract_strided_slice %175 {offsets = [0, 256], sizes = [8, 128], strides = [1, 1]} : vector<8x384xf32> to vector<8x128xf32>
    %194 = vector.extract_strided_slice %176 {offsets = [0, 256], sizes = [8, 128], strides = [1, 1]} : vector<8x384xf32> to vector<8x128xf32>
    %195 = arith.addf %194, %6 : vector<8x128xf32>
    %196 = arith.mulf %184, %195 : vector<8x128xf32>
    %197 = arith.addf %193, %196 : vector<8x128xf32>
    %198 = math.tanh %197 : vector<8x128xf32>
    %199 = arith.subf %168, %198 : vector<8x128xf32>
    %200 = arith.mulf %192, %199 : vector<8x128xf32>
    %201 = arith.addf %198, %200 : vector<8x128xf32>
    %202 = arith.index_cast %c5_i32 : i32 to index
    %c0_46 = arith.constant 0 : index
    %c0_47 = arith.constant 0 : index
    %203 = vector.load %arg5[%202, %c0_46, %c0_47] : memref<8x8x128xf32, #tpu.memory_space<vmem>>, vector<1x8x128xf32>
    %204 = vector.shape_cast %203 : vector<1x8x128xf32> to vector<8x128xf32>
    %205 = vector.shape_cast %201 : vector<8x128xf32> to vector<1x8x128xf32>
    tpu.vector_store %arg5[%202, %c0_46, %c0_47], %205 {strides = array<i32>} : memref<8x8x128xf32, #tpu.memory_space<vmem>>, vector<1x8x128xf32>,
    %c6_i32 = arith.constant 6 : i32
    %206 = arith.index_cast %c6_i32 : i32 to index
    %c0_48 = arith.constant 0 : index
    %c0_49 = arith.constant 0 : index
    %207 = vector.load %arg2[%206, %c0_48, %c0_49] : memref<8x8x384xf32, #tpu.memory_space<vmem>>, vector<1x8x384xf32>
    %208 = vector.shape_cast %207 : vector<1x8x384xf32> to vector<8x384xf32>
    %cst_50 = arith.constant dense<0.000000e+00> : vector<8x384xf32>
    %209 = tpu.matmul %201, %3, %cst_50 {dimension_numbers = #tpu.dot_dimension_numbers<[1], [0], [0], [1], [0, 0, 1, 1], [], []>} : vector<8x128xf32>, vector<128x384xf32>, vector<8x384xf32> -> vector<8x384xf32>
    %210 = vector.extract_strided_slice %208 {offsets = [0, 0], sizes = [8, 128], strides = [1, 1]} : vector<8x384xf32> to vector<8x128xf32>
    %211 = vector.extract_strided_slice %209 {offsets = [0, 0], sizes = [8, 128], strides = [1, 1]} : vector<8x384xf32> to vector<8x128xf32>
    %212 = arith.addf %210, %211 : vector<8x128xf32>
    %213 = arith.negf %212 : vector<8x128xf32>
    %214 = math.exp %213 : vector<8x128xf32>
    %cst_51 = arith.constant 1.000000e+00 : f32
    %215 = vector.broadcast %cst_51 : f32 to vector<8x128xf32>
    %216 = arith.addf %215, %214 : vector<8x128xf32>
    %217 = arith.divf %215, %216 : vector<8x128xf32>
    %218 = vector.extract_strided_slice %208 {offsets = [0, 128], sizes = [8, 128], strides = [1, 1]} : vector<8x384xf32> to vector<8x128xf32>
    %219 = vector.extract_strided_slice %209 {offsets = [0, 128], sizes = [8, 128], strides = [1, 1]} : vector<8x384xf32> to vector<8x128xf32>
    %220 = arith.addf %218, %219 : vector<8x128xf32>
    %221 = arith.negf %220 : vector<8x128xf32>
    %222 = math.exp %221 : vector<8x128xf32>
    %cst_52 = arith.constant 1.000000e+00 : f32
    %223 = vector.broadcast %cst_52 : f32 to vector<8x128xf32>
    %224 = arith.addf %223, %222 : vector<8x128xf32>
    %225 = arith.divf %223, %224 : vector<8x128xf32>
    %226 = vector.extract_strided_slice %208 {offsets = [0, 256], sizes = [8, 128], strides = [1, 1]} : vector<8x384xf32> to vector<8x128xf32>
    %227 = vector.extract_strided_slice %209 {offsets = [0, 256], sizes = [8, 128], strides = [1, 1]} : vector<8x384xf32> to vector<8x128xf32>
    %228 = arith.addf %227, %6 : vector<8x128xf32>
    %229 = arith.mulf %217, %228 : vector<8x128xf32>
    %230 = arith.addf %226, %229 : vector<8x128xf32>
    %231 = math.tanh %230 : vector<8x128xf32>
    %232 = arith.subf %201, %231 : vector<8x128xf32>
    %233 = arith.mulf %225, %232 : vector<8x128xf32>
    %234 = arith.addf %231, %233 : vector<8x128xf32>
    %235 = arith.index_cast %c6_i32 : i32 to index
    %c0_53 = arith.constant 0 : index
    %c0_54 = arith.constant 0 : index
    %236 = vector.load %arg5[%235, %c0_53, %c0_54] : memref<8x8x128xf32, #tpu.memory_space<vmem>>, vector<1x8x128xf32>
    %237 = vector.shape_cast %236 : vector<1x8x128xf32> to vector<8x128xf32>
    %238 = vector.shape_cast %234 : vector<8x128xf32> to vector<1x8x128xf32>
    tpu.vector_store %arg5[%235, %c0_53, %c0_54], %238 {strides = array<i32>} : memref<8x8x128xf32, #tpu.memory_space<vmem>>, vector<1x8x128xf32>,
    %c7_i32 = arith.constant 7 : i32
    %239 = arith.index_cast %c7_i32 : i32 to index
    %c0_55 = arith.constant 0 : index
    %c0_56 = arith.constant 0 : index
    %240 = vector.load %arg2[%239, %c0_55, %c0_56] : memref<8x8x384xf32, #tpu.memory_space<vmem>>, vector<1x8x384xf32>
    %241 = vector.shape_cast %240 : vector<1x8x384xf32> to vector<8x384xf32>
    %cst_57 = arith.constant dense<0.000000e+00> : vector<8x384xf32>
    %242 = tpu.matmul %234, %3, %cst_57 {dimension_numbers = #tpu.dot_dimension_numbers<[1], [0], [0], [1], [0, 0, 1, 1], [], []>} : vector<8x128xf32>, vector<128x384xf32>, vector<8x384xf32> -> vector<8x384xf32>
    %243 = vector.extract_strided_slice %241 {offsets = [0, 0], sizes = [8, 128], strides = [1, 1]} : vector<8x384xf32> to vector<8x128xf32>
    %244 = vector.extract_strided_slice %242 {offsets = [0, 0], sizes = [8, 128], strides = [1, 1]} : vector<8x384xf32> to vector<8x128xf32>
    %245 = arith.addf %243, %244 : vector<8x128xf32>
    %246 = arith.negf %245 : vector<8x128xf32>
    %247 = math.exp %246 : vector<8x128xf32>
    %cst_58 = arith.constant 1.000000e+00 : f32
    %248 = vector.broadcast %cst_58 : f32 to vector<8x128xf32>
    %249 = arith.addf %248, %247 : vector<8x128xf32>
    %250 = arith.divf %248, %249 : vector<8x128xf32>
    %251 = vector.extract_strided_slice %241 {offsets = [0, 128], sizes = [8, 128], strides = [1, 1]} : vector<8x384xf32> to vector<8x128xf32>
    %252 = vector.extract_strided_slice %242 {offsets = [0, 128], sizes = [8, 128], strides = [1, 1]} : vector<8x384xf32> to vector<8x128xf32>
    %253 = arith.addf %251, %252 : vector<8x128xf32>
    %254 = arith.negf %253 : vector<8x128xf32>
    %255 = math.exp %254 : vector<8x128xf32>
    %cst_59 = arith.constant 1.000000e+00 : f32
    %256 = vector.broadcast %cst_59 : f32 to vector<8x128xf32>
    %257 = arith.addf %256, %255 : vector<8x128xf32>
    %258 = arith.divf %256, %257 : vector<8x128xf32>
    %259 = vector.extract_strided_slice %241 {offsets = [0, 256], sizes = [8, 128], strides = [1, 1]} : vector<8x384xf32> to vector<8x128xf32>
    %260 = vector.extract_strided_slice %242 {offsets = [0, 256], sizes = [8, 128], strides = [1, 1]} : vector<8x384xf32> to vector<8x128xf32>
    %261 = arith.addf %260, %6 : vector<8x128xf32>
    %262 = arith.mulf %250, %261 : vector<8x128xf32>
    %263 = arith.addf %259, %262 : vector<8x128xf32>
    %264 = math.tanh %263 : vector<8x128xf32>
    %265 = arith.subf %234, %264 : vector<8x128xf32>
    %266 = arith.mulf %258, %265 : vector<8x128xf32>
    %267 = arith.addf %264, %266 : vector<8x128xf32>
    %268 = arith.index_cast %c7_i32 : i32 to index
    %c0_60 = arith.constant 0 : index
    %c0_61 = arith.constant 0 : index
    %269 = vector.load %arg5[%268, %c0_60, %c0_61] : memref<8x8x128xf32, #tpu.memory_space<vmem>>, vector<1x8x128xf32>
    %270 = vector.shape_cast %269 : vector<1x8x128xf32> to vector<8x128xf32>
    %271 = vector.shape_cast %267 : vector<8x128xf32> to vector<1x8x128xf32>
    tpu.vector_store %arg5[%268, %c0_60, %c0_61], %271 {strides = array<i32>} : memref<8x8x128xf32, #tpu.memory_space<vmem>>, vector<1x8x128xf32>,
    %c8_i32 = arith.constant 8 : i32
    %c0_62 = arith.constant 0 : index
    %c0_63 = arith.constant 0 : index
    %272 = vector.load %arg6[%c0_62, %c0_63] : memref<8x128xf32, #tpu.memory_space<vmem>>, vector<8x128xf32>
    tpu.vector_store %arg6[%c0_62, %c0_63], %267 {strides = array<i32>} : memref<8x128xf32, #tpu.memory_space<vmem>>, vector<8x128xf32>,
    return
  }
  func.func @transform_0(%arg0: i32, %arg1: i32) -> (i32, i32, i32) {
    %c0_i32 = arith.constant 0 : i32
    %c0_i32_0 = arith.constant 0 : i32
    return %arg1, %arg0, %c0_i32 : i32, i32, i32
  }
  func.func @transform_1(%arg0: i32, %arg1: i32) -> (i32, i32) {
    %c0_i32 = arith.constant 0 : i32
    %c0_i32_0 = arith.constant 0 : i32
    %c0_i32_1 = arith.constant 0 : i32
    return %c0_i32, %c0_i32_0 : i32, i32
  }
  func.func @transform_2(%arg0: i32, %arg1: i32) -> (i32, i32) {
    %c0_i32 = arith.constant 0 : i32
    %c0_i32_0 = arith.constant 0 : i32
    %c0_i32_1 = arith.constant 0 : i32
    return %c0_i32, %c0_i32_0 : i32, i32
  }
  func.func @transform_3(%arg0: i32, %arg1: i32) -> (i32, i32, i32) {
    %c0_i32 = arith.constant 0 : i32
    %c0_i32_0 = arith.constant 0 : i32
    return %arg1, %arg0, %c0_i32 : i32, i32, i32
  }
}

</mosaic_0001>

<llo_original>
// kernel: tpu_custom_call.1
$region0: #{tpu_custom_call.1}
  #allocation0 [shape = 'u32[]', space=smem, size = 0x4, offset = 0x4, fixed_abs, tag = 'smem constant byte address 0x4 - core index']
  #allocation1 [shape = 'u32[72,128]{1,0:T(1,128)}', space=vmem, size = 0x9000, scoped, tag = 'internal scratch']
  #allocation2 [shape = 'f32[8,128]{1,0:T(8,128)}', space=vmem, size = 0x1000, scoped, tag = 'scratch operand']
  %s0 = inlined_call_operand.hbm [shape: f32[8,8,384], index: 0, kind: input, shape index: {}]
  %s1 = inlined_call_operand.hbm [shape: f32[128,384], index: 1, kind: input, shape index: {}]
  %s2 = inlined_call_operand.vmem [shape: f32[1,128], index: 2, kind: input, shape index: {}]
  %s3 = inlined_call_operand.hbm [shape: f32[8,8,128], index: 3, kind: output, shape index: {}]
  %s4 = sld [smem:[#allocation0]]
  $region34: #{tpu_custom_call.1} parent=0
    _
  %s6 = ssub.s32 1, %s4
  %s7 = scalar_select 0, %s6, %s4
  $region1: #{tpu_custom_call.1} parent=0
    #allocation3 [shape = 'u8[98304]{0}', space=vmem, size = 0x18000, scoped, tag = 'input window, operand 0, single buffered']
    #allocation4 [shape = 's32[1]{0}', space=sflag, size = 0x4, scoped, tag = 'scoped memory for tpu_custom_call.1']
    #allocation5 [shape = 's32[1]{0}', space=sflag, size = 0x4, scoped, tag = 'scoped memory for tpu_custom_call.1']
    #allocation6 [shape = 'u8[196608]{0}', space=vmem, size = 0x30000, scoped, tag = 'input window, operand 1, single buffered']
    #allocation7 [shape = 's32[1]{0}', space=sflag, size = 0x4, scoped, tag = 'scoped memory for tpu_custom_call.1']
    #allocation8 [shape = 'u8[32768]{0}', space=vmem, size = 0x8000, scoped, tag = 'output window, operand 0, single buffered']
    %8 = vsyncpa [#allocation4], 0
    %9 = vsyncpa [#allocation7], 0
    %10 = vsyncpa [#allocation5], 0
    // Predicated region
    $region2: #{tpu_custom_call.1} parent=1 // pred_check
      _
    $region3: #{tpu_custom_call.1} parent=1 // pred_check_branch
      %12 = sbr.rel (0) target = $region5
    $region4: #{tpu_custom_call.1} parent=1 // pred_region
      %14 = vsyncadd [#allocation4], 0
      %s15 = sshll.u32 %s0, 4
      %s16 = int_to_ptr.hbm [resolvable:$true] %s15
      %s17 = sshll.u32 [#allocation3], 4
      %s18 = int_to_ptr.vmem [resolvable:$true] %s17
      %23 = dma.hbm_to_vmem [thread:$0]  %s16, 3072, %s18, [#allocation4], 384, 384, 24
    $region5: #{tpu_custom_call.1} parent=1 // pred_fallthru
      _
    // Predicated region
    $region6: #{tpu_custom_call.1} parent=1 // pred_check
      _
    $region7: #{tpu_custom_call.1} parent=1 // pred_check_branch
      %25 = sbr.rel (0) target = $region9
    $region8: #{tpu_custom_call.1} parent=1 // pred_region
      %27 = vsyncadd [#allocation7], 0
      %s28 = sshll.u32 %s1, 4
      %s29 = int_to_ptr.hbm [resolvable:$true] %s28
      %s30 = sshll.u32 [#allocation6], 4
      %s31 = int_to_ptr.vmem [resolvable:$true] %s30
      %36 = dma.hbm_to_vmem [thread:$0]  %s29, 6144, %s31, [#allocation7], 384, 384, 24
    $region9: #{tpu_custom_call.1} parent=1 // pred_fallthru
      _
    // Predicated region
    $region10: #{tpu_custom_call.1} parent=1 // pred_check
      _
    $region11: #{tpu_custom_call.1} parent=1 // pred_check_branch
      %38 = sbr.rel (0) target = $region13
    $region12: #{tpu_custom_call.1} parent=1 // pred_region
      _
    $region13: #{tpu_custom_call.1} parent=1 // pred_fallthru
      _
    // Predicated region
    $region14: #{tpu_custom_call.1} parent=1 // pred_check
      _
    $region15: #{tpu_custom_call.1} parent=1 // pred_check_branch
      %40 = sbr.rel (0) target = $region17
    $region16: #{tpu_custom_call.1} parent=1 // pred_region
      %42 = dma.done [#allocation4], 3072
    $region17: #{tpu_custom_call.1} parent=1 // pred_fallthru
      _
    // Predicated region
    $region18: #{tpu_custom_call.1} parent=1 // pred_check
      _
    $region19: #{tpu_custom_call.1} parent=1 // pred_check_branch
      %44 = sbr.rel (0) target = $region21
    $region20: #{tpu_custom_call.1} parent=1 // pred_region
      %46 = dma.done [#allocation7], 6144
    $region21: #{tpu_custom_call.1} parent=1 // pred_fallthru
      _
    %p47 = scmp.eq.s32.totalorder 0, 0
    // Predicated region
    $region22: #{tpu_custom_call.1} parent=1 // pred_check
      %p48 = pneg %p47
    $region23: #{tpu_custom_call.1} parent=1 // pred_check_branch
      %50 = sbr.rel (%p48) target = $region25
    $region24: #{tpu_custom_call.1} parent=1 // pred_region
      %51 = vst [vmem:[#allocation2] sm:$0xff] 0.0
    $region25: #{tpu_custom_call.1} parent=1 // pred_fallthru
      _
    %v52 = vld [vmem:[#allocation6] sm:$0xff]
    %v53 = vld [vmem:[#allocation6 + $0x8] sm:$0xff]
    %v54 = vld [vmem:[#allocation6 + $0x10] sm:$0xff]
    %v55 = vld [vmem:[#allocation6 + $0x18] sm:$0xff]
    %v56 = vld [vmem:[#allocation6 + $0x20] sm:$0xff]
    %v57 = vld [vmem:[#allocation6 + $0x28] sm:$0xff]
    %v58 = vld [vmem:[#allocation6 + $0x30] sm:$0xff]
    %v59 = vld [vmem:[#allocation6 + $0x38] sm:$0xff]
    %v60 = vld [vmem:[#allocation6 + $0x40] sm:$0xff]
    %v61 = vld [vmem:[#allocation6 + $0x48] sm:$0xff]
    %v62 = vld [vmem:[#allocation6 + $0x50] sm:$0xff]
    %v63 = vld [vmem:[#allocation6 + $0x58] sm:$0xff]
    %v64 = vld [vmem:[#allocation6 + $0x60] sm:$0xff]
    %v65 = vld [vmem:[#allocation6 + $0x68] sm:$0xff]
    %v66 = vld [vmem:[#allocation6 + $0x70] sm:$0xff]
    %v67 = vld [vmem:[#allocation6 + $0x78] sm:$0xff]
    %v68 = vld [vmem:[#allocation6 + $0x80] sm:$0xff]
    %v69 = vld [vmem:[#allocation6 + $0x88] sm:$0xff]
    %v70 = vld [vmem:[#allocation6 + $0x90] sm:$0xff]
    %v71 = vld [vmem:[#allocation6 + $0x98] sm:$0xff]
    %v72 = vld [vmem:[#allocation6 + $0xa0] sm:$0xff]
    %v73 = vld [vmem:[#allocation6 + $0xa8] sm:$0xff]
    %v74 = vld [vmem:[#allocation6 + $0xb0] sm:$0xff]
    %v75 = vld [vmem:[#allocation6 + $0xb8] sm:$0xff]
    %v76 = vld [vmem:[#allocation6 + $0xc0] sm:$0xff]
    %v77 = vld [vmem:[#allocation6 + $0xc8] sm:$0xff]
    %v78 = vld [vmem:[#allocation6 + $0xd0] sm:$0xff]
    %v79 = vld [vmem:[#allocation6 + $0xd8] sm:$0xff]
    %v80 = vld [vmem:[#allocation6 + $0xe0] sm:$0xff]
    %v81 = vld [vmem:[#allocation6 + $0xe8] sm:$0xff]
    %v82 = vld [vmem:[#allocation6 + $0xf0] sm:$0xff]
    %v83 = vld [vmem:[#allocation6 + $0xf8] sm:$0xff]
    %v84 = vld [vmem:[#allocation6 + $0x100] sm:$0xff]
    %v85 = vld [vmem:[#allocation6 + $0x108] sm:$0xff]
    %v86 = vld [vmem:[#allocation6 + $0x110] sm:$0xff]
    %v87 = vld [vmem:[#allocation6 + $0x118] sm:$0xff]
    %v88 = vld [vmem:[#allocation6 + $0x120] sm:$0xff]
    %v89 = vld [vmem:[#allocation6 + $0x128] sm:$0xff]
    %v90 = vld [vmem:[#allocation6 + $0x130] sm:$0xff]
    %v91 = vld [vmem:[#allocation6 + $0x138] sm:$0xff]
    %v92 = vld [vmem:[#allocation6 + $0x140] sm:$0xff]
    %v93 = vld [vmem:[#allocation6 + $0x148] sm:$0xff]
    %v94 = vld [vmem:[#allocation6 + $0x150] sm:$0xff]
    %v95 = vld [vmem:[#allocation6 + $0x158] sm:$0xff]
    %v96 = vld [vmem:[#allocation6 + $0x160] sm:$0xff]
    %v97 = vld [vmem:[#allocation6 + $0x168] sm:$0xff]
    %v98 = vld [vmem:[#allocation6 + $0x170] sm:$0xff]
    %v99 = vld [vmem:[#allocation6 + $0x178] sm:$0xff]
    %v100 = vld [vmem:[%s2] sm:$0x1]
    %v102 = vperm.slane %v100, 0
    %v104 = vld [vmem:[#allocation2] sm:$0xff]
    %v105 = vld [vmem:[#allocation3] sm:$0xff]
    %v106 = vld [vmem:[#allocation3 + $0x8] sm:$0xff]
    %v107 = vld [vmem:[#allocation3 + $0x10] sm:$0xff]
    %108 = vmatpush.msra.mxu0 %v97
    %109 = vmatpush.msra.mxu0 %v94
    %110 = vmatpush.msra.mxu0 %v91
    %111 = vmatpush.msra.mxu0 %v88
    %112 = vmatpush.msra.mxu0 %v85
    %113 = vmatpush.msra.mxu0 %v82
    %114 = vmatpush.msra.mxu0 %v79
    %115 = vmatpush.msra.mxu0 %v76
    %116 = vmatpush.msra.mxu0 %v73
    %117 = vmatpush.msra.mxu0 %v70
    %118 = vmatpush.msra.mxu0 %v67
    %119 = vmatpush.msra.mxu0 %v64
    %120 = vmatpush.msra.mxu0 %v61
    %121 = vmatpush.msra.mxu0 %v58
    %122 = vmatpush.msra.mxu0 %v55
    %123 = vmatpush.msra.mxu0 %v52
    %124 = vmatmul.f32.gmra.mxu0 %v104
    %v125 = vpop.f32.mrf.mxu0
    %v126 = vadd.f32 0.0, %v125
    %127 = vdwg.mxu0
    %128 = vmatpush.msra.mxu0 %v98
    %129 = vmatpush.msra.mxu0 %v95
    %130 = vmatpush.msra.mxu0 %v92
    %131 = vmatpush.msra.mxu0 %v89
    %132 = vmatpush.msra.mxu0 %v86
    %133 = vmatpush.msra.mxu0 %v83
    %134 = vmatpush.msra.mxu0 %v80
    %135 = vmatpush.msra.mxu0 %v77
    %136 = vmatpush.msra.mxu0 %v74
    %137 = vmatpush.msra.mxu0 %v71
    %138 = vmatpush.msra.mxu0 %v68
    %139 = vmatpush.msra.mxu0 %v65
    %140 = vmatpush.msra.mxu0 %v62
    %141 = vmatpush.msra.mxu0 %v59
    %142 = vmatpush.msra.mxu0 %v56
    %143 = vmatpush.msra.mxu0 %v53
    %144 = vmatmul.f32.gmra.mxu0 %v104
    %v145 = vpop.f32.mrf.mxu0
    %v146 = vadd.f32 0.0, %v145
    %147 = vdwg.mxu0
    %148 = vmatpush.msra.mxu0 %v99
    %149 = vmatpush.msra.mxu0 %v96
    %150 = vmatpush.msra.mxu0 %v93
    %151 = vmatpush.msra.mxu0 %v90
    %152 = vmatpush.msra.mxu0 %v87
    %153 = vmatpush.msra.mxu0 %v84
    %154 = vmatpush.msra.mxu0 %v81
    %155 = vmatpush.msra.mxu0 %v78
    %156 = vmatpush.msra.mxu0 %v75
    %157 = vmatpush.msra.mxu0 %v72
    %158 = vmatpush.msra.mxu0 %v69
    %159 = vmatpush.msra.mxu0 %v66
    %160 = vmatpush.msra.mxu0 %v63
    %161 = vmatpush.msra.mxu0 %v60
    %162 = vmatpush.msra.mxu0 %v57
    %163 = vmatpush.msra.mxu0 %v54
    %164 = vmatmul.f32.gmra.mxu0 %v104
    %v165 = vpop.f32.mrf.mxu0
    %v166 = vadd.f32 0.0, %v165
    %167 = vdwg.mxu0
    %v168 = vadd.f32 %v105, %v126
    %v169 = vxor.u32 %v168, 2147483648
    %v170 = vmul.f32 %v169, 1.442695
    %v171 = vpow.pop %v170
    %v172 = vadd.f32 %v171, 1.0
    %v173 = vrcp.pop %v172
    %v174 = vmul.f32 %v172, %v173
    %v175 = vsub.f32 1.0, %v174
    %v176 = vmul.f32 %v173, %v175
    %v177 = vadd.f32 %v173, %v176
    %vm178 = vweird.f32 %v172
    %vm179 = vweird.f32 %v173
    %vm180 = vmor %vm178, %vm179
    %v181 = vsel %vm180, %v173, %v177
    %v182 = vand.u32 2147483647, %v172
    %vm183 = vcmp.eq.f32.partialorder %v182, 8.507059e+37
    %v184 = vand.u32 %v172, 2147483648
    %v185 = vor.u32 1.1754944e-38, %v184
    %v186 = vsel %vm183, %v185, %v181
    %v187 = vmul.f32 1.0, %v186
    %v188 = vadd.f32 %v106, %v146
    %v189 = vxor.u32 %v188, 2147483648
    %v190 = vmul.f32 %v189, 1.442695
    %v191 = vpow.pop %v190
    %v192 = vadd.f32 %v191, 1.0
    %v193 = vrcp.pop %v192
    %v194 = vmul.f32 %v192, %v193
    %v195 = vsub.f32 1.0, %v194
    %v196 = vmul.f32 %v193, %v195
    %v197 = vadd.f32 %v193, %v196
    %vm198 = vweird.f32 %v192
    %vm199 = vweird.f32 %v193
    %vm200 = vmor %vm198, %vm199
    %v201 = vsel %vm200, %v193, %v197
    %v202 = vand.u32 2147483647, %v192
    %vm203 = vcmp.eq.f32.partialorder %v202, 8.507059e+37
    %v204 = vand.u32 %v192, 2147483648
    %v205 = vor.u32 1.1754944e-38, %v204
    %v206 = vsel %vm203, %v205, %v201
    %v207 = vmul.f32 1.0, %v206
    %v208 = vadd.f32 %v166, %v102
    %v209 = vmul.f32 %v187, %v208
    %v210 = vadd.f32 %v107, %v209
    %v211 = vtanh.pop %v210
    %v212 = vsub.f32 %v104, %v211
    %v213 = vmul.f32 %v207, %v212
    %v214 = vadd.f32 %v211, %v213
    %215 = vst [vmem:[#allocation8] sm:$0xff] %v214
    %s216 = scalar_lea.vmem [#allocation3], 24
    %v217 = vld [vmem:[%s216] sm:$0xff]
    %v218 = vld [vmem:[%s216 + $0x8] sm:$0xff]
    %v219 = vld [vmem:[%s216 + $0x10] sm:$0xff]
    %220 = vmatpush.msra.mxu0 %v97
    %221 = vmatpush.msra.mxu0 %v94
    %222 = vmatpush.msra.mxu0 %v91
    %223 = vmatpush.msra.mxu0 %v88
    %224 = vmatpush.msra.mxu0 %v85
    %225 = vmatpush.msra.mxu0 %v82
    %226 = vmatpush.msra.mxu0 %v79
    %227 = vmatpush.msra.mxu0 %v76
    %228 = vmatpush.msra.mxu0 %v73
    %229 = vmatpush.msra.mxu0 %v70
    %230 = vmatpush.msra.mxu0 %v67
    %231 = vmatpush.msra.mxu0 %v64
    %232 = vmatpush.msra.mxu0 %v61
    %233 = vmatpush.msra.mxu0 %v58
    %234 = vmatpush.msra.mxu0 %v55
    %235 = vmatpush.msra.mxu0 %v52
    %236 = vmatmul.f32.gmra.mxu0 %v214
    %v237 = vpop.f32.mrf.mxu0
    %v238 = vadd.f32 0.0, %v237
    %239 = vdwg.mxu0
    %240 = vmatpush.msra.mxu0 %v98
    %241 = vmatpush.msra.mxu0 %v95
    %242 = vmatpush.msra.mxu0 %v92
    %243 = vmatpush.msra.mxu0 %v89
    %244 = vmatpush.msra.mxu0 %v86
    %245 = vmatpush.msra.mxu0 %v83
    %246 = vmatpush.msra.mxu0 %v80
    %247 = vmatpush.msra.mxu0 %v77
    %248 = vmatpush.msra.mxu0 %v74
    %249 = vmatpush.msra.mxu0 %v71
    %250 = vmatpush.msra.mxu0 %v68
    %251 = vmatpush.msra.mxu0 %v65
    %252 = vmatpush.msra.mxu0 %v62
    %253 = vmatpush.msra.mxu0 %v59
    %254 = vmatpush.msra.mxu0 %v56
    %255 = vmatpush.msra.mxu0 %v53
    %256 = vmatmul.f32.gmra.mxu0 %v214
    %v257 = vpop.f32.mrf.mxu0
    %v258 = vadd.f32 0.0, %v257
    %259 = vdwg.mxu0
    %260 = vmatpush.msra.mxu0 %v99
    %261 = vmatpush.msra.mxu0 %v96
    %262 = vmatpush.msra.mxu0 %v93
    %263 = vmatpush.msra.mxu0 %v90
    %264 = vmatpush.msra.mxu0 %v87
    %265 = vmatpush.msra.mxu0 %v84
    %266 = vmatpush.msra.mxu0 %v81
    %267 = vmatpush.msra.mxu0 %v78
    %268 = vmatpush.msra.mxu0 %v75
    %269 = vmatpush.msra.mxu0 %v72
    %270 = vmatpush.msra.mxu0 %v69
    %271 = vmatpush.msra.mxu0 %v66
    %272 = vmatpush.msra.mxu0 %v63
    %273 = vmatpush.msra.mxu0 %v60
    %274 = vmatpush.msra.mxu0 %v57
    %275 = vmatpush.msra.mxu0 %v54
    %276 = vmatmul.f32.gmra.mxu0 %v214
    %v277 = vpop.f32.mrf.mxu0
    %v278 = vadd.f32 0.0, %v277
    %279 = vdwg.mxu0
    %v280 = vadd.f32 %v217, %v238
    %v281 = vxor.u32 %v280, 2147483648
    %v282 = vmul.f32 %v281, 1.442695
    %v283 = vpow.pop %v282
    %v284 = vadd.f32 %v283, 1.0
    %v285 = vrcp.pop %v284
    %v286 = vmul.f32 %v284, %v285
    %v287 = vsub.f32 1.0, %v286
    %v288 = vmul.f32 %v285, %v287
    %v289 = vadd.f32 %v285, %v288
    %vm290 = vweird.f32 %v284
    %vm291 = vweird.f32 %v285
    %vm292 = vmor %vm290, %vm291
    %v293 = vsel %vm292, %v285, %v289
    %v294 = vand.u32 2147483647, %v284
    %vm295 = vcmp.eq.f32.partialorder %v294, 8.507059e+37
    %v296 = vand.u32 %v284, 2147483648
    %v297 = vor.u32 1.1754944e-38, %v296
    %v298 = vsel %vm295, %v297, %v293
    %v299 = vmul.f32 1.0, %v298
    %v300 = vadd.f32 %v218, %v258
    %v301 = vxor.u32 %v300, 2147483648
    %v302 = vmul.f32 %v301, 1.442695
    %v303 = vpow.pop %v302
    %v304 = vadd.f32 %v303, 1.0
    %v305 = vrcp.pop %v304
    %v306 = vmul.f32 %v304, %v305
    %v307 = vsub.f32 1.0, %v306
    %v308 = vmul.f32 %v305, %v307
    %v309 = vadd.f32 %v305, %v308
    %vm310 = vweird.f32 %v304
    %vm311 = vweird.f32 %v305
    %vm312 = vmor %vm310, %vm311
    %v313 = vsel %vm312, %v305, %v309
    %v314 = vand.u32 2147483647, %v304
    %vm315 = vcmp.eq.f32.partialorder %v314, 8.507059e+37
    %v316 = vand.u32 %v304, 2147483648
    %v317 = vor.u32 1.1754944e-38, %v316
    %v318 = vsel %vm315, %v317, %v313
    %v319 = vmul.f32 1.0, %v318
    %v320 = vadd.f32 %v278, %v102
    %v321 = vmul.f32 %v299, %v320
    %v322 = vadd.f32 %v219, %v321
    %v323 = vtanh.pop %v322
    %v324 = vsub.f32 %v214, %v323
    %v325 = vmul.f32 %v319, %v324
    %v326 = vadd.f32 %v323, %v325
    %s327 = scalar_lea.vmem [#allocation8], 8
    %328 = vst [vmem:[%s327] sm:$0xff] %v326
    %s329 = scalar_lea.vmem [#allocation3], 48
    %v330 = vld [vmem:[%s329] sm:$0xff]
    %v331 = vld [vmem:[%s329 + $0x8] sm:$0xff]
    %v332 = vld [vmem:[%s329 + $0x10] sm:$0xff]
    %333 = vmatpush.msra.mxu0 %v97
    %334 = vmatpush.msra.mxu0 %v94
    %335 = vmatpush.msra.mxu0 %v91
    %336 = vmatpush.msra.mxu0 %v88
    %337 = vmatpush.msra.mxu0 %v85
    %338 = vmatpush.msra.mxu0 %v82
    %339 = vmatpush.msra.mxu0 %v79
    %340 = vmatpush.msra.mxu0 %v76
    %341 = vmatpush.msra.mxu0 %v73
    %342 = vmatpush.msra.mxu0 %v70
    %343 = vmatpush.msra.mxu0 %v67
    %344 = vmatpush.msra.mxu0 %v64
    %345 = vmatpush.msra.mxu0 %v61
    %346 = vmatpush.msra.mxu0 %v58
    %347 = vmatpush.msra.mxu0 %v55
    %348 = vmatpush.msra.mxu0 %v52
    %349 = vmatmul.f32.gmra.mxu0 %v326
    %v350 = vpop.f32.mrf.mxu0
    %v351 = vadd.f32 0.0, %v350
    %352 = vdwg.mxu0
    %353 = vmatpush.msra.mxu0 %v98
    %354 = vmatpush.msra.mxu0 %v95
    %355 = vmatpush.msra.mxu0 %v92
    %356 = vmatpush.msra.mxu0 %v89
    %357 = vmatpush.msra.mxu0 %v86
    %358 = vmatpush.msra.mxu0 %v83
    %359 = vmatpush.msra.mxu0 %v80
    %360 = vmatpush.msra.mxu0 %v77
    %361 = vmatpush.msra.mxu0 %v74
    %362 = vmatpush.msra.mxu0 %v71
    %363 = vmatpush.msra.mxu0 %v68
    %364 = vmatpush.msra.mxu0 %v65
    %365 = vmatpush.msra.mxu0 %v62
    %366 = vmatpush.msra.mxu0 %v59
    %367 = vmatpush.msra.mxu0 %v56
    %368 = vmatpush.msra.mxu0 %v53
    %369 = vmatmul.f32.gmra.mxu0 %v326
    %v370 = vpop.f32.mrf.mxu0
    %v371 = vadd.f32 0.0, %v370
    %372 = vdwg.mxu0
    %373 = vmatpush.msra.mxu0 %v99
    %374 = vmatpush.msra.mxu0 %v96
    %375 = vmatpush.msra.mxu0 %v93
    %376 = vmatpush.msra.mxu0 %v90
    %377 = vmatpush.msra.mxu0 %v87
    %378 = vmatpush.msra.mxu0 %v84
    %379 = vmatpush.msra.mxu0 %v81
    %380 = vmatpush.msra.mxu0 %v78
    %381 = vmatpush.msra.mxu0 %v75
    %382 = vmatpush.msra.mxu0 %v72
    %383 = vmatpush.msra.mxu0 %v69
    %384 = vmatpush.msra.mxu0 %v66
    %385 = vmatpush.msra.mxu0 %v63
    %386 = vmatpush.msra.mxu0 %v60
    %387 = vmatpush.msra.mxu0 %v57
    %388 = vmatpush.msra.mxu0 %v54
    %389 = vmatmul.f32.gmra.mxu0 %v326
    %v390 = vpop.f32.mrf.mxu0
    %v391 = vadd.f32 0.0, %v390
    %392 = vdwg.mxu0
    %v393 = vadd.f32 %v330, %v351
    %v394 = vxor.u32 %v393, 2147483648
    %v395 = vmul.f32 %v394, 1.442695
    %v396 = vpow.pop %v395
    %v397 = vadd.f32 %v396, 1.0
    %v398 = vrcp.pop %v397
    %v399 = vmul.f32 %v397, %v398
    %v400 = vsub.f32 1.0, %v399
    %v401 = vmul.f32 %v398, %v400
    %v402 = vadd.f32 %v398, %v401
    %vm403 = vweird.f32 %v397
    %vm404 = vweird.f32 %v398
    %vm405 = vmor %vm403, %vm404
    %v406 = vsel %vm405, %v398, %v402
    %v407 = vand.u32 2147483647, %v397
    %vm408 = vcmp.eq.f32.partialorder %v407, 8.507059e+37
    %v409 = vand.u32 %v397, 2147483648
    %v410 = vor.u32 1.1754944e-38, %v409
    %v411 = vsel %vm408, %v410, %v406
    %v412 = vmul.f32 1.0, %v411
    %v413 = vadd.f32 %v331, %v371
    %v414 = vxor.u32 %v413, 2147483648
    %v415 = vmul.f32 %v414, 1.442695
    %v416 = vpow.pop %v415
    %v417 = vadd.f32 %v416, 1.0
    %v418 = vrcp.pop %v417
    %v419 = vmul.f32 %v417, %v418
    %v420 = vsub.f32 1.0, %v419
    %v421 = vmul.f32 %v418, %v420
    %v422 = vadd.f32 %v418, %v421
    %vm423 = vweird.f32 %v417
    %vm424 = vweird.f32 %v418
    %vm425 = vmor %vm423, %vm424
    %v426 = vsel %vm425, %v418, %v422
    %v427 = vand.u32 2147483647, %v417
    %vm428 = vcmp.eq.f32.partialorder %v427, 8.507059e+37
    %v429 = vand.u32 %v417, 2147483648
    %v430 = vor.u32 1.1754944e-38, %v429
    %v431 = vsel %vm428, %v430, %v426
    %v432 = vmul.f32 1.0, %v431
    %v433 = vadd.f32 %v391, %v102
    %v434 = vmul.f32 %v412, %v433
    %v435 = vadd.f32 %v332, %v434
    %v436 = vtanh.pop %v435
    %v437 = vsub.f32 %v326, %v436
    %v438 = vmul.f32 %v432, %v437
    %v439 = vadd.f32 %v436, %v438
    %s440 = scalar_lea.vmem [#allocation8], 16
    %441 = vst [vmem:[%s440] sm:$0xff] %v439
    %s442 = scalar_lea.vmem [#allocation3], 72
    %v443 = vld [vmem:[%s442] sm:$0xff]
    %v444 = vld [vmem:[%s442 + $0x8] sm:$0xff]
    %v445 = vld [vmem:[%s442 + $0x10] sm:$0xff]
    %446 = vmatpush.msra.mxu0 %v97
    %447 = vmatpush.msra.mxu0 %v94
    %448 = vmatpush.msra.mxu0 %v91
    %449 = vmatpush.msra.mxu0 %v88
    %450 = vmatpush.msra.mxu0 %v85
    %451 = vmatpush.msra.mxu0 %v82
    %452 = vmatpush.msra.mxu0 %v79
    %453 = vmatpush.msra.mxu0 %v76
    %454 = vmatpush.msra.mxu0 %v73
    %455 = vmatpush.msra.mxu0 %v70
    %456 = vmatpush.msra.mxu0 %v67
    %457 = vmatpush.msra.mxu0 %v64
    %458 = vmatpush.msra.mxu0 %v61
    %459 = vmatpush.msra.mxu0 %v58
    %460 = vmatpush.msra.mxu0 %v55
    %461 = vmatpush.msra.mxu0 %v52
    %462 = vmatmul.f32.gmra.mxu0 %v439
    %v463 = vpop.f32.mrf.mxu0
    %v464 = vadd.f32 0.0, %v463
    %465 = vdwg.mxu0
    %466 = vmatpush.msra.mxu0 %v98
    %467 = vmatpush.msra.mxu0 %v95
    %468 = vmatpush.msra.mxu0 %v92
    %469 = vmatpush.msra.mxu0 %v89
    %470 = vmatpush.msra.mxu0 %v86
    %471 = vmatpush.msra.mxu0 %v83
    %472 = vmatpush.msra.mxu0 %v80
    %473 = vmatpush.msra.mxu0 %v77
    %474 = vmatpush.msra.mxu0 %v74
    %475 = vmatpush.msra.mxu0 %v71
    %476 = vmatpush.msra.mxu0 %v68
    %477 = vmatpush.msra.mxu0 %v65
    %478 = vmatpush.msra.mxu0 %v62
    %479 = vmatpush.msra.mxu0 %v59
    %480 = vmatpush.msra.mxu0 %v56
    %481 = vmatpush.msra.mxu0 %v53
    %482 = vmatmul.f32.gmra.mxu0 %v439
    %v483 = vpop.f32.mrf.mxu0
    %v484 = vadd.f32 0.0, %v483
    %485 = vdwg.mxu0
    %486 = vmatpush.msra.mxu0 %v99
    %487 = vmatpush.msra.mxu0 %v96
    %488 = vmatpush.msra.mxu0 %v93
    %489 = vmatpush.msra.mxu0 %v90
    %490 = vmatpush.msra.mxu0 %v87
    %491 = vmatpush.msra.mxu0 %v84
    %492 = vmatpush.msra.mxu0 %v81
    %493 = vmatpush.msra.mxu0 %v78
    %494 = vmatpush.msra.mxu0 %v75
    %495 = vmatpush.msra.mxu0 %v72
    %496 = vmatpush.msra.mxu0 %v69
    %497 = vmatpush.msra.mxu0 %v66
    %498 = vmatpush.msra.mxu0 %v63
    %499 = vmatpush.msra.mxu0 %v60
    %500 = vmatpush.msra.mxu0 %v57
    %501 = vmatpush.msra.mxu0 %v54
    %502 = vmatmul.f32.gmra.mxu0 %v439
    %v503 = vpop.f32.mrf.mxu0
    %v504 = vadd.f32 0.0, %v503
    %505 = vdwg.mxu0
    %v506 = vadd.f32 %v443, %v464
    %v507 = vxor.u32 %v506, 2147483648
    %v508 = vmul.f32 %v507, 1.442695
    %v509 = vpow.pop %v508
    %v510 = vadd.f32 %v509, 1.0
    %v511 = vrcp.pop %v510
    %v512 = vmul.f32 %v510, %v511
    %v513 = vsub.f32 1.0, %v512
    %v514 = vmul.f32 %v511, %v513
    %v515 = vadd.f32 %v511, %v514
    %vm516 = vweird.f32 %v510
    %vm517 = vweird.f32 %v511
    %vm518 = vmor %vm516, %vm517
    %v519 = vsel %vm518, %v511, %v515
    %v520 = vand.u32 2147483647, %v510
    %vm521 = vcmp.eq.f32.partialorder %v520, 8.507059e+37
    %v522 = vand.u32 %v510, 2147483648
    %v523 = vor.u32 1.1754944e-38, %v522
    %v524 = vsel %vm521, %v523, %v519
    %v525 = vmul.f32 1.0, %v524
    %v526 = vadd.f32 %v444, %v484
    %v527 = vxor.u32 %v526, 2147483648
    %v528 = vmul.f32 %v527, 1.442695
    %v529 = vpow.pop %v528
    %v530 = vadd.f32 %v529, 1.0
    %v531 = vrcp.pop %v530
    %v532 = vmul.f32 %v530, %v531
    %v533 = vsub.f32 1.0, %v532
    %v534 = vmul.f32 %v531, %v533
    %v535 = vadd.f32 %v531, %v534
    %vm536 = vweird.f32 %v530
    %vm537 = vweird.f32 %v531
    %vm538 = vmor %vm536, %vm537
    %v539 = vsel %vm538, %v531, %v535
    %v540 = vand.u32 2147483647, %v530
    %vm541 = vcmp.eq.f32.partialorder %v540, 8.507059e+37
    %v542 = vand.u32 %v530, 2147483648
    %v543 = vor.u32 1.1754944e-38, %v542
    %v544 = vsel %vm541, %v543, %v539
    %v545 = vmul.f32 1.0, %v544
    %v546 = vadd.f32 %v504, %v102
    %v547 = vmul.f32 %v525, %v546
    %v548 = vadd.f32 %v445, %v547
    %v549 = vtanh.pop %v548
    %v550 = vsub.f32 %v439, %v549
    %v551 = vmul.f32 %v545, %v550
    %v552 = vadd.f32 %v549, %v551
    %s553 = scalar_lea.vmem [#allocation8], 24
    %554 = vst [vmem:[%s553] sm:$0xff] %v552
    %s555 = scalar_lea.vmem [#allocation3], 96
    %v556 = vld [vmem:[%s555] sm:$0xff]
    %v557 = vld [vmem:[%s555 + $0x8] sm:$0xff]
    %v558 = vld [vmem:[%s555 + $0x10] sm:$0xff]
    %559 = vmatpush.msra.mxu0 %v97
    %560 = vmatpush.msra.mxu0 %v94
    %561 = vmatpush.msra.mxu0 %v91
    %562 = vmatpush.msra.mxu0 %v88
    %563 = vmatpush.msra.mxu0 %v85
    %564 = vmatpush.msra.mxu0 %v82
    %565 = vmatpush.msra.mxu0 %v79
    %566 = vmatpush.msra.mxu0 %v76
    %567 = vmatpush.msra.mxu0 %v73
    %568 = vmatpush.msra.mxu0 %v70
    %569 = vmatpush.msra.mxu0 %v67
    %570 = vmatpush.msra.mxu0 %v64
    %571 = vmatpush.msra.mxu0 %v61
    %572 = vmatpush.msra.mxu0 %v58
    %573 = vmatpush.msra.mxu0 %v55
    %574 = vmatpush.msra.mxu0 %v52
    %575 = vmatmul.f32.gmra.mxu0 %v552
    %v576 = vpop.f32.mrf.mxu0
    %v577 = vadd.f32 0.0, %v576
    %578 = vdwg.mxu0
    %579 = vmatpush.msra.mxu0 %v98
    %580 = vmatpush.msra.mxu0 %v95
    %581 = vmatpush.msra.mxu0 %v92
    %582 = vmatpush.msra.mxu0 %v89
    %583 = vmatpush.msra.mxu0 %v86
    %584 = vmatpush.msra.mxu0 %v83
    %585 = vmatpush.msra.mxu0 %v80
    %586 = vmatpush.msra.mxu0 %v77
    %587 = vmatpush.msra.mxu0 %v74
    %588 = vmatpush.msra.mxu0 %v71
    %589 = vmatpush.msra.mxu0 %v68
    %590 = vmatpush.msra.mxu0 %v65
    %591 = vmatpush.msra.mxu0 %v62
    %592 = vmatpush.msra.mxu0 %v59
    %593 = vmatpush.msra.mxu0 %v56
    %594 = vmatpush.msra.mxu0 %v53
    %595 = vmatmul.f32.gmra.mxu0 %v552
    %v596 = vpop.f32.mrf.mxu0
    %v597 = vadd.f32 0.0, %v596
    %598 = vdwg.mxu0
    %599 = vmatpush.msra.mxu0 %v99
    %600 = vmatpush.msra.mxu0 %v96
    %601 = vmatpush.msra.mxu0 %v93
    %602 = vmatpush.msra.mxu0 %v90
    %603 = vmatpush.msra.mxu0 %v87
    %604 = vmatpush.msra.mxu0 %v84
    %605 = vmatpush.msra.mxu0 %v81
    %606 = vmatpush.msra.mxu0 %v78
    %607 = vmatpush.msra.mxu0 %v75
    %608 = vmatpush.msra.mxu0 %v72
    %609 = vmatpush.msra.mxu0 %v69
    %610 = vmatpush.msra.mxu0 %v66
    %611 = vmatpush.msra.mxu0 %v63
    %612 = vmatpush.msra.mxu0 %v60
    %613 = vmatpush.msra.mxu0 %v57
    %614 = vmatpush.msra.mxu0 %v54
    %615 = vmatmul.f32.gmra.mxu0 %v552
    %v616 = vpop.f32.mrf.mxu0
    %v617 = vadd.f32 0.0, %v616
    %618 = vdwg.mxu0
    %v619 = vadd.f32 %v556, %v577
    %v620 = vxor.u32 %v619, 2147483648
    %v621 = vmul.f32 %v620, 1.442695
    %v622 = vpow.pop %v621
    %v623 = vadd.f32 %v622, 1.0
    %v624 = vrcp.pop %v623
    %v625 = vmul.f32 %v623, %v624
    %v626 = vsub.f32 1.0, %v625
    %v627 = vmul.f32 %v624, %v626
    %v628 = vadd.f32 %v624, %v627
    %vm629 = vweird.f32 %v623
    %vm630 = vweird.f32 %v624
    %vm631 = vmor %vm629, %vm630
    %v632 = vsel %vm631, %v624, %v628
    %v633 = vand.u32 2147483647, %v623
    %vm634 = vcmp.eq.f32.partialorder %v633, 8.507059e+37
    %v635 = vand.u32 %v623, 2147483648
    %v636 = vor.u32 1.1754944e-38, %v635
    %v637 = vsel %vm634, %v636, %v632
    %v638 = vmul.f32 1.0, %v637
    %v639 = vadd.f32 %v557, %v597
    %v640 = vxor.u32 %v639, 2147483648
    %v641 = vmul.f32 %v640, 1.442695
    %v642 = vpow.pop %v641
    %v643 = vadd.f32 %v642, 1.0
    %v644 = vrcp.pop %v643
    %v645 = vmul.f32 %v643, %v644
    %v646 = vsub.f32 1.0, %v645
    %v647 = vmul.f32 %v644, %v646
    %v648 = vadd.f32 %v644, %v647
    %vm649 = vweird.f32 %v643
    %vm650 = vweird.f32 %v644
    %vm651 = vmor %vm649, %vm650
    %v652 = vsel %vm651, %v644, %v648
    %v653 = vand.u32 2147483647, %v643
    %vm654 = vcmp.eq.f32.partialorder %v653, 8.507059e+37
    %v655 = vand.u32 %v643, 2147483648
    %v656 = vor.u32 1.1754944e-38, %v655
    %v657 = vsel %vm654, %v656, %v652
    %v658 = vmul.f32 1.0, %v657
    %v659 = vadd.f32 %v617, %v102
    %v660 = vmul.f32 %v638, %v659
    %v661 = vadd.f32 %v558, %v660
    %v662 = vtanh.pop %v661
    %v663 = vsub.f32 %v552, %v662
    %v664 = vmul.f32 %v658, %v663
    %v665 = vadd.f32 %v662, %v664
    %s666 = scalar_lea.vmem [#allocation8], 32
    %667 = vst [vmem:[%s666] sm:$0xff] %v665
    %s668 = scalar_lea.vmem [#allocation3], 120
    %v669 = vld [vmem:[%s668] sm:$0xff]
    %v670 = vld [vmem:[%s668 + $0x8] sm:$0xff]
    %v671 = vld [vmem:[%s668 + $0x10] sm:$0xff]
    %672 = vmatpush.msra.mxu0 %v97
    %673 = vmatpush.msra.mxu0 %v94
    %674 = vmatpush.msra.mxu0 %v91
    %675 = vmatpush.msra.mxu0 %v88
    %676 = vmatpush.msra.mxu0 %v85
    %677 = vmatpush.msra.mxu0 %v82
    %678 = vmatpush.msra.mxu0 %v79
    %679 = vmatpush.msra.mxu0 %v76
    %680 = vmatpush.msra.mxu0 %v73
    %681 = vmatpush.msra.mxu0 %v70
    %682 = vmatpush.msra.mxu0 %v67
    %683 = vmatpush.msra.mxu0 %v64
    %684 = vmatpush.msra.mxu0 %v61
    %685 = vmatpush.msra.mxu0 %v58
    %686 = vmatpush.msra.mxu0 %v55
    %687 = vmatpush.msra.mxu0 %v52
    %688 = vmatmul.f32.gmra.mxu0 %v665
    %v689 = vpop.f32.mrf.mxu0
    %v690 = vadd.f32 0.0, %v689
    %691 = vdwg.mxu0
    %692 = vmatpush.msra.mxu0 %v98
    %693 = vmatpush.msra.mxu0 %v95
    %694 = vmatpush.msra.mxu0 %v92
    %695 = vmatpush.msra.mxu0 %v89
    %696 = vmatpush.msra.mxu0 %v86
    %697 = vmatpush.msra.mxu0 %v83
    %698 = vmatpush.msra.mxu0 %v80
    %699 = vmatpush.msra.mxu0 %v77
    %700 = vmatpush.msra.mxu0 %v74
    %701 = vmatpush.msra.mxu0 %v71
    %702 = vmatpush.msra.mxu0 %v68
    %703 = vmatpush.msra.mxu0 %v65
    %704 = vmatpush.msra.mxu0 %v62
    %705 = vmatpush.msra.mxu0 %v59
    %706 = vmatpush.msra.mxu0 %v56
    %707 = vmatpush.msra.mxu0 %v53
    %708 = vmatmul.f32.gmra.mxu0 %v665
    %v709 = vpop.f32.mrf.mxu0
    %v710 = vadd.f32 0.0, %v709
    %711 = vdwg.mxu0
    %712 = vmatpush.msra.mxu0 %v99
    %713 = vmatpush.msra.mxu0 %v96
    %714 = vmatpush.msra.mxu0 %v93
    %715 = vmatpush.msra.mxu0 %v90
    %716 = vmatpush.msra.mxu0 %v87
    %717 = vmatpush.msra.mxu0 %v84
    %718 = vmatpush.msra.mxu0 %v81
    %719 = vmatpush.msra.mxu0 %v78
    %720 = vmatpush.msra.mxu0 %v75
    %721 = vmatpush.msra.mxu0 %v72
    %722 = vmatpush.msra.mxu0 %v69
    %723 = vmatpush.msra.mxu0 %v66
    %724 = vmatpush.msra.mxu0 %v63
    %725 = vmatpush.msra.mxu0 %v60
    %726 = vmatpush.msra.mxu0 %v57
    %727 = vmatpush.msra.mxu0 %v54
    %728 = vmatmul.f32.gmra.mxu0 %v665
    %v729 = vpop.f32.mrf.mxu0
    %v730 = vadd.f32 0.0, %v729
    %731 = vdwg.mxu0
    %v732 = vadd.f32 %v669, %v690
    %v733 = vxor.u32 %v732, 2147483648
    %v734 = vmul.f32 %v733, 1.442695
    %v735 = vpow.pop %v734
    %v736 = vadd.f32 %v735, 1.0
    %v737 = vrcp.pop %v736
    %v738 = vmul.f32 %v736, %v737
    %v739 = vsub.f32 1.0, %v738
    %v740 = vmul.f32 %v737, %v739
    %v741 = vadd.f32 %v737, %v740
    %vm742 = vweird.f32 %v736
    %vm743 = vweird.f32 %v737
    %vm744 = vmor %vm742, %vm743
    %v745 = vsel %vm744, %v737, %v741
    %v746 = vand.u32 2147483647, %v736
    %vm747 = vcmp.eq.f32.partialorder %v746, 8.507059e+37
    %v748 = vand.u32 %v736, 2147483648
    %v749 = vor.u32 1.1754944e-38, %v748
    %v750 = vsel %vm747, %v749, %v745
    %v751 = vmul.f32 1.0, %v750
    %v752 = vadd.f32 %v670, %v710
    %v753 = vxor.u32 %v752, 2147483648
    %v754 = vmul.f32 %v753, 1.442695
    %v755 = vpow.pop %v754
    %v756 = vadd.f32 %v755, 1.0
    %v757 = vrcp.pop %v756
    %v758 = vmul.f32 %v756, %v757
    %v759 = vsub.f32 1.0, %v758
    %v760 = vmul.f32 %v757, %v759
    %v761 = vadd.f32 %v757, %v760
    %vm762 = vweird.f32 %v756
    %vm763 = vweird.f32 %v757
    %vm764 = vmor %vm762, %vm763
    %v765 = vsel %vm764, %v757, %v761
    %v766 = vand.u32 2147483647, %v756
    %vm767 = vcmp.eq.f32.partialorder %v766, 8.507059e+37
    %v768 = vand.u32 %v756, 2147483648
    %v769 = vor.u32 1.1754944e-38, %v768
    %v770 = vsel %vm767, %v769, %v765
    %v771 = vmul.f32 1.0, %v770
    %v772 = vadd.f32 %v730, %v102
    %v773 = vmul.f32 %v751, %v772
    %v774 = vadd.f32 %v671, %v773
    %v775 = vtanh.pop %v774
    %v776 = vsub.f32 %v665, %v775
    %v777 = vmul.f32 %v771, %v776
    %v778 = vadd.f32 %v775, %v777
    %s779 = scalar_lea.vmem [#allocation8], 40
    %780 = vst [vmem:[%s779] sm:$0xff] %v778
    %s781 = scalar_lea.vmem [#allocation3], 144
    %v782 = vld [vmem:[%s781] sm:$0xff]
    %v783 = vld [vmem:[%s781 + $0x8] sm:$0xff]
    %v784 = vld [vmem:[%s781 + $0x10] sm:$0xff]
    %785 = vmatpush.msra.mxu0 %v97
    %786 = vmatpush.msra.mxu0 %v94
    %787 = vmatpush.msra.mxu0 %v91
    %788 = vmatpush.msra.mxu0 %v88
    %789 = vmatpush.msra.mxu0 %v85
    %790 = vmatpush.msra.mxu0 %v82
    %791 = vmatpush.msra.mxu0 %v79
    %792 = vmatpush.msra.mxu0 %v76
    %793 = vmatpush.msra.mxu0 %v73
    %794 = vmatpush.msra.mxu0 %v70
    %795 = vmatpush.msra.mxu0 %v67
    %796 = vmatpush.msra.mxu0 %v64
    %797 = vmatpush.msra.mxu0 %v61
    %798 = vmatpush.msra.mxu0 %v58
    %799 = vmatpush.msra.mxu0 %v55
    %800 = vmatpush.msra.mxu0 %v52
    %801 = vmatmul.f32.gmra.mxu0 %v778
    %v802 = vpop.f32.mrf.mxu0
    %v803 = vadd.f32 0.0, %v802
    %804 = vdwg.mxu0
    %805 = vmatpush.msra.mxu0 %v98
    %806 = vmatpush.msra.mxu0 %v95
    %807 = vmatpush.msra.mxu0 %v92
    %808 = vmatpush.msra.mxu0 %v89
    %809 = vmatpush.msra.mxu0 %v86
    %810 = vmatpush.msra.mxu0 %v83
    %811 = vmatpush.msra.mxu0 %v80
    %812 = vmatpush.msra.mxu0 %v77
    %813 = vmatpush.msra.mxu0 %v74
    %814 = vmatpush.msra.mxu0 %v71
    %815 = vmatpush.msra.mxu0 %v68
    %816 = vmatpush.msra.mxu0 %v65
    %817 = vmatpush.msra.mxu0 %v62
    %818 = vmatpush.msra.mxu0 %v59
    %819 = vmatpush.msra.mxu0 %v56
    %820 = vmatpush.msra.mxu0 %v53
    %821 = vmatmul.f32.gmra.mxu0 %v778
    %v822 = vpop.f32.mrf.mxu0
    %v823 = vadd.f32 0.0, %v822
    %824 = vdwg.mxu0
    %825 = vmatpush.msra.mxu0 %v99
    %826 = vmatpush.msra.mxu0 %v96
    %827 = vmatpush.msra.mxu0 %v93
    %828 = vmatpush.msra.mxu0 %v90
    %829 = vmatpush.msra.mxu0 %v87
    %830 = vmatpush.msra.mxu0 %v84
    %831 = vmatpush.msra.mxu0 %v81
    %832 = vmatpush.msra.mxu0 %v78
    %833 = vmatpush.msra.mxu0 %v75
    %834 = vmatpush.msra.mxu0 %v72
    %835 = vmatpush.msra.mxu0 %v69
    %836 = vmatpush.msra.mxu0 %v66
    %837 = vmatpush.msra.mxu0 %v63
    %838 = vmatpush.msra.mxu0 %v60
    %839 = vmatpush.msra.mxu0 %v57
    %840 = vmatpush.msra.mxu0 %v54
    %841 = vmatmul.f32.gmra.mxu0 %v778
    %v842 = vpop.f32.mrf.mxu0
    %v843 = vadd.f32 0.0, %v842
    %844 = vdwg.mxu0
    %v845 = vadd.f32 %v782, %v803
    %v846 = vxor.u32 %v845, 2147483648
    %v847 = vmul.f32 %v846, 1.442695
    %v848 = vpow.pop %v847
    %v849 = vadd.f32 %v848, 1.0
    %v850 = vrcp.pop %v849
    %v851 = vmul.f32 %v849, %v850
    %v852 = vsub.f32 1.0, %v851
    %v853 = vmul.f32 %v850, %v852
    %v854 = vadd.f32 %v850, %v853
    %vm855 = vweird.f32 %v849
    %vm856 = vweird.f32 %v850
    %vm857 = vmor %vm855, %vm856
    %v858 = vsel %vm857, %v850, %v854
    %v859 = vand.u32 2147483647, %v849
    %vm860 = vcmp.eq.f32.partialorder %v859, 8.507059e+37
    %v861 = vand.u32 %v849, 2147483648
    %v862 = vor.u32 1.1754944e-38, %v861
    %v863 = vsel %vm860, %v862, %v858
    %v864 = vmul.f32 1.0, %v863
    %v865 = vadd.f32 %v783, %v823
    %v866 = vxor.u32 %v865, 2147483648
    %v867 = vmul.f32 %v866, 1.442695
    %v868 = vpow.pop %v867
    %v869 = vadd.f32 %v868, 1.0
    %v870 = vrcp.pop %v869
    %v871 = vmul.f32 %v869, %v870
    %v872 = vsub.f32 1.0, %v871
    %v873 = vmul.f32 %v870, %v872
    %v874 = vadd.f32 %v870, %v873
    %vm875 = vweird.f32 %v869
    %vm876 = vweird.f32 %v870
    %vm877 = vmor %vm875, %vm876
    %v878 = vsel %vm877, %v870, %v874
    %v879 = vand.u32 2147483647, %v869
    %vm880 = vcmp.eq.f32.partialorder %v879, 8.507059e+37
    %v881 = vand.u32 %v869, 2147483648
    %v882 = vor.u32 1.1754944e-38, %v881
    %v883 = vsel %vm880, %v882, %v878
    %v884 = vmul.f32 1.0, %v883
    %v885 = vadd.f32 %v843, %v102
    %v886 = vmul.f32 %v864, %v885
    %v887 = vadd.f32 %v784, %v886
    %v888 = vtanh.pop %v887
    %v889 = vsub.f32 %v778, %v888
    %v890 = vmul.f32 %v884, %v889
    %v891 = vadd.f32 %v888, %v890
    %s892 = scalar_lea.vmem [#allocation8], 48
    %893 = vst [vmem:[%s892] sm:$0xff] %v891
    %s894 = scalar_lea.vmem [#allocation3], 168
    %v895 = vld [vmem:[%s894] sm:$0xff]
    %v896 = vld [vmem:[%s894 + $0x8] sm:$0xff]
    %v897 = vld [vmem:[%s894 + $0x10] sm:$0xff]
    %898 = vmatpush.msra.mxu0 %v97
    %899 = vmatpush.msra.mxu0 %v94
    %900 = vmatpush.msra.mxu0 %v91
    %901 = vmatpush.msra.mxu0 %v88
    %902 = vmatpush.msra.mxu0 %v85
    %903 = vmatpush.msra.mxu0 %v82
    %904 = vmatpush.msra.mxu0 %v79
    %905 = vmatpush.msra.mxu0 %v76
    %906 = vmatpush.msra.mxu0 %v73
    %907 = vmatpush.msra.mxu0 %v70
    %908 = vmatpush.msra.mxu0 %v67
    %909 = vmatpush.msra.mxu0 %v64
    %910 = vmatpush.msra.mxu0 %v61
    %911 = vmatpush.msra.mxu0 %v58
    %912 = vmatpush.msra.mxu0 %v55
    %913 = vmatpush.msra.mxu0 %v52
    %914 = vmatmul.f32.gmra.mxu0 %v891
    %v915 = vpop.f32.mrf.mxu0
    %v916 = vadd.f32 0.0, %v915
    %917 = vdwg.mxu0
    %918 = vmatpush.msra.mxu0 %v98
    %919 = vmatpush.msra.mxu0 %v95
    %920 = vmatpush.msra.mxu0 %v92
    %921 = vmatpush.msra.mxu0 %v89
    %922 = vmatpush.msra.mxu0 %v86
    %923 = vmatpush.msra.mxu0 %v83
    %924 = vmatpush.msra.mxu0 %v80
    %925 = vmatpush.msra.mxu0 %v77
    %926 = vmatpush.msra.mxu0 %v74
    %927 = vmatpush.msra.mxu0 %v71
    %928 = vmatpush.msra.mxu0 %v68
    %929 = vmatpush.msra.mxu0 %v65
    %930 = vmatpush.msra.mxu0 %v62
    %931 = vmatpush.msra.mxu0 %v59
    %932 = vmatpush.msra.mxu0 %v56
    %933 = vmatpush.msra.mxu0 %v53
    %934 = vmatmul.f32.gmra.mxu0 %v891
    %v935 = vpop.f32.mrf.mxu0
    %v936 = vadd.f32 0.0, %v935
    %937 = vdwg.mxu0
    %938 = vmatpush.msra.mxu0 %v99
    %939 = vmatpush.msra.mxu0 %v96
    %940 = vmatpush.msra.mxu0 %v93
    %941 = vmatpush.msra.mxu0 %v90
    %942 = vmatpush.msra.mxu0 %v87
    %943 = vmatpush.msra.mxu0 %v84
    %944 = vmatpush.msra.mxu0 %v81
    %945 = vmatpush.msra.mxu0 %v78
    %946 = vmatpush.msra.mxu0 %v75
    %947 = vmatpush.msra.mxu0 %v72
    %948 = vmatpush.msra.mxu0 %v69
    %949 = vmatpush.msra.mxu0 %v66
    %950 = vmatpush.msra.mxu0 %v63
    %951 = vmatpush.msra.mxu0 %v60
    %952 = vmatpush.msra.mxu0 %v57
    %953 = vmatpush.msra.mxu0 %v54
    %954 = vmatmul.f32.gmra.mxu0 %v891
    %v955 = vpop.f32.mrf.mxu0
    %v956 = vadd.f32 0.0, %v955
    %957 = vdwg.mxu0
    %v958 = vadd.f32 %v895, %v916
    %v959 = vxor.u32 %v958, 2147483648
    %v960 = vmul.f32 %v959, 1.442695
    %v961 = vpow.pop %v960
    %v962 = vadd.f32 %v961, 1.0
    %v963 = vrcp.pop %v962
    %v964 = vmul.f32 %v962, %v963
    %v965 = vsub.f32 1.0, %v964
    %v966 = vmul.f32 %v963, %v965
    %v967 = vadd.f32 %v963, %v966
    %vm968 = vweird.f32 %v962
    %vm969 = vweird.f32 %v963
    %vm970 = vmor %vm968, %vm969
    %v971 = vsel %vm970, %v963, %v967
    %v972 = vand.u32 2147483647, %v962
    %vm973 = vcmp.eq.f32.partialorder %v972, 8.507059e+37
    %v974 = vand.u32 %v962, 2147483648
    %v975 = vor.u32 1.1754944e-38, %v974
    %v976 = vsel %vm973, %v975, %v971
    %v977 = vmul.f32 1.0, %v976
    %v978 = vadd.f32 %v896, %v936
    %v979 = vxor.u32 %v978, 2147483648
    %v980 = vmul.f32 %v979, 1.442695
    %v981 = vpow.pop %v980
    %v982 = vadd.f32 %v981, 1.0
    %v983 = vrcp.pop %v982
    %v984 = vmul.f32 %v982, %v983
    %v985 = vsub.f32 1.0, %v984
    %v986 = vmul.f32 %v983, %v985
    %v987 = vadd.f32 %v983, %v986
    %vm988 = vweird.f32 %v982
    %vm989 = vweird.f32 %v983
    %vm990 = vmor %vm988, %vm989
    %v991 = vsel %vm990, %v983, %v987
    %v992 = vand.u32 2147483647, %v982
    %vm993 = vcmp.eq.f32.partialorder %v992, 8.507059e+37
    %v994 = vand.u32 %v982, 2147483648
    %v995 = vor.u32 1.1754944e-38, %v994
    %v996 = vsel %vm993, %v995, %v991
    %v997 = vmul.f32 1.0, %v996
    %v998 = vadd.f32 %v956, %v102
    %v999 = vmul.f32 %v977, %v998
    %v1000 = vadd.f32 %v897, %v999
    %v1001 = vtanh.pop %v1000
    %v1002 = vsub.f32 %v891, %v1001
    %v1003 = vmul.f32 %v997, %v1002
    %v1004 = vadd.f32 %v1001, %v1003
    %s1005 = scalar_lea.vmem [#allocation8], 56
    %1006 = vst [vmem:[%s1005] sm:$0xff] %v1004
    %1007 = vst [vmem:[#allocation2] sm:$0xff] %v1004
    // Predicated region
    $region26: #{tpu_custom_call.1} parent=1 // pred_check
      _
    $region27: #{tpu_custom_call.1} parent=1 // pred_check_branch
      %1009 = sbr.rel (0) target = $region29
    $region28: #{tpu_custom_call.1} parent=1 // pred_region
      %1011 = vsyncadd [#allocation5], 0
      %s1012 = sshll.u32 [#allocation8], 4
      %s1013 = int_to_ptr.vmem [resolvable:$true] %s1012
      %s1014 = sshll.u32 %s3, 4
      %s1015 = int_to_ptr.hbm [resolvable:$true] %s1014
      %1020 = dma.vmem_to_hbm [thread:$0]  %s1013, 1024, %s1015, [#allocation5], 128, 128, 8
    $region29: #{tpu_custom_call.1} parent=1 // pred_fallthru
      _
    // Predicated region
    $region30: #{tpu_custom_call.1} parent=1 // pred_check
      _
    $region31: #{tpu_custom_call.1} parent=1 // pred_check_branch
      %1022 = sbr.rel (0) target = $region33
    $region32: #{tpu_custom_call.1} parent=1 // pred_region
      %1024 = dma.done [#allocation5], 1024
    $region33: #{tpu_custom_call.1} parent=1 // pred_fallthru
      _
    %1025 = vsyncpa [#allocation4], 1
    %1026 = vsyncpa [#allocation7], 1
    %1027 = vsyncpa [#allocation5], 1

</llo_original>
